<compile_context>
chip_gen: v7x
topology: tpu7x:2x2x1
jax: 0.10.0
libtpu: 0.0.40
codegen_flags: <defaults>
</compile_context>

<pallas_src>
import jax
import jax.numpy as jnp
from jax.experimental import pallas as pl
from jax.experimental.pallas import tpu as pltpu

LANE = 128
VMEM_LIMIT = 32 * 1024 * 1024  # bytes; safe on v5e/v6e/v7x, >> our tile budget


def _round_up(x, m):
    return ((x + m - 1) // m) * m


def _pad2(x, rows, cols):
    r, c = x.shape
    return jnp.pad(x, ((0, rows - r), (0, cols - c)))


# ----------------------------------------------------------------------------
# Kernels
# ----------------------------------------------------------------------------

def _enc_self_kernel(xs_ref, xn_ref, w1_ref, b1_ref, w2a_ref, w2b_ref, b2_ref,
                     wg1_ref, l1_ref, h1_ref):
    """Per-node work: l1 = linear_out_self(cat(xs, relu(linear_in_self(xs)))),
    h1 = xn @ Wg1 (GCN1 feature transform, pre-aggregation)."""
    f32 = jnp.float32
    xs = xs_ref[...]                                              # (tm, Csp) bf16
    a1 = jnp.dot(xs, w1_ref[...], preferred_element_type=f32) + b1_ref[...]
    a1 = jnp.maximum(a1, 0.0)                                     # (tm, 2Hp) f32
    l1 = (jnp.dot(xs, w2a_ref[...], preferred_element_type=f32)
          + jnp.dot(a1.astype(jnp.bfloat16), w2b_ref[...],
                    preferred_element_type=f32)
          + b2_ref[...])
    l1_ref[...] = l1.astype(l1_ref.dtype)
    h1_ref[...] = jnp.dot(xn_ref[...], wg1_ref[...],
                          preferred_element_type=f32).astype(h1_ref.dtype)


def _gcn_agg1_kernel(a_ref, h1_ref, bg1_ref, wg2_ref, g1_ref, h2_ref, acc_ref):
    """g1 = A_hat @ h1 + bg1 (tiled reduction over K);
    h2 = g1 @ Wg2 fused into the finalize (local to the row block)."""
    k = pl.program_id(1)

    @pl.when(k == 0)
    def _():
        acc_ref[...] = jnp.zeros_like(acc_ref)

    acc_ref[...] += jnp.dot(a_ref[...], h1_ref[...],
                            preferred_element_type=jnp.float32)

    @pl.when(k == pl.num_programs(1) - 1)
    def _():
        g1 = acc_ref[...] + bg1_ref[...]
        g1_bf = g1.astype(jnp.bfloat16)
        g1_ref[...] = g1_bf
        h2_ref[...] = jnp.dot(g1_bf, wg2_ref[...],
                              preferred_element_type=jnp.float32
                              ).astype(h2_ref.dtype)


def _gcn_agg2_kernel(a_ref, h2_ref, xn_ref, g1_ref, l1_ref,
                     bg2_ref, w3a_ref, w3b_ref, w3c_ref, b3_ref,
                     z_ref, acc_ref):
    """g2 = A_hat @ h2 + bg2; x2 = linear_out(cat(xn, g1, g2)) as split
    matmuls; z block = [l1 | x2] assembled directly into the output."""
    k = pl.program_id(1)

    @pl.when(k == 0)
    def _():
        acc_ref[...] = jnp.zeros_like(acc_ref)

    acc_ref[...] += jnp.dot(a_ref[...], h2_ref[...],
                            preferred_element_type=jnp.float32)

    @pl.when(k == pl.num_programs(1) - 1)
    def _():
        f32 = jnp.float32
        g2 = (acc_ref[...] + bg2_ref[...]).astype(jnp.bfloat16)
        x2 = (jnp.dot(xn_ref[...], w3a_ref[...], preferred_element_type=f32)
              + jnp.dot(g1_ref[...], w3b_ref[...], preferred_element_type=f32)
              + jnp.dot(g2, w3c_ref[...], preferred_element_type=f32)
              + b3_ref[...])
        hp = l1_ref.shape[1]
        z_ref[:, :hp] = l1_ref[...]
        z_ref[:, hp:] = x2.astype(z_ref.dtype)


def _decoder_kernel(zi_ref, zj_ref, adj_ref):
    """adj[i,j] block = sigmoid(z_i @ z_j^T) as one dot_general contracting
    the last (feature) dims of both operands — no transpose, one MXU pass."""
    logits = jax.lax.dot_general(
        zi_ref[...], zj_ref[...],
        dimension_numbers=(((1,), (1,)), ((), ())),
        preferred_element_type=jnp.float32)
    adj_ref[...] = jax.nn.sigmoid(logits)


# ----------------------------------------------------------------------------
# Parameters / graph glue
# ----------------------------------------------------------------------------

def init_params(key, c_self, c_agg, h):
    """Deterministic nn.Linear-style init (uniform +-1/sqrt(fan_in)).
    Returns (raw f32 params for the reference, lane-padded bf16 kernel params,
    dims)."""
    def linear(k, fan_in, fan_out):
        k1, k2 = jax.random.split(k)
        bound = 1.0 / float(fan_in) ** 0.5
        w = jax.random.uniform(k1, (fan_in, fan_out), jnp.float32, -bound, bound)
        b = jax.random.uniform(k2, (1, fan_out), jnp.float32, -bound, bound)
        return w, b

    keys = jax.random.split(key, 6)
    w1, b1 = linear(keys[0], c_self, 2 * h)            # linear_in_self
    w2, b2 = linear(keys[1], c_self + 2 * h, h)        # linear_out_self
    wg1, bg1 = linear(keys[2], c_agg, 2 * h)           # gcn1
    wg2, bg2 = linear(keys[3], 2 * h, h)               # gcn2
    # gcn3 exists in __init__ but is unused by forward().
    w3, b3 = linear(keys[4], c_agg + 3 * h, h)         # linear_out

    raw = dict(w1=w1, b1=b1, w2=w2, b2=b2, wg1=wg1, bg1=bg1,
               wg2=wg2, bg2=bg2, w3=w3, b3=b3)

    csp = _round_up(c_self, LANE)
    cap = _round_up(c_agg, LANE)
    hp = _round_up(h, LANE)
    bf = jnp.bfloat16

    # Zero-padding keeps every padded feature column exactly 0 end-to-end,
    # so the padded algebra is identical to the unpadded one.
    params = dict(
        w1=_pad2(w1, csp, 2 * hp).astype(bf),
        b1=_pad2(b1, 1, 2 * hp),
        w2a=_pad2(w2[:c_self], csp, hp).astype(bf),
        w2b=_pad2(w2[c_self:], 2 * hp, hp).astype(bf),
        b2=_pad2(b2, 1, hp),
        wg1=_pad2(wg1, cap, 2 * hp).astype(bf),
        bg1=_pad2(bg1, 1, 2 * hp),
        wg2=_pad2(wg2, 2 * hp, hp).astype(bf),
        bg2=_pad2(bg2, 1, hp),
        w3a=_pad2(w3[:c_agg], cap, hp).astype(bf),
        w3b=_pad2(w3[c_agg:c_agg + 2 * h], 2 * hp, hp).astype(bf),
        w3c=_pad2(w3[c_agg + 2 * h:], hp, hp).astype(bf),
        b3=_pad2(b3, 1, hp),
    )
    dims = dict(csp=csp, cap=cap, hp=hp)
    return raw, params, dims


def gcn_norm_adj(edge_index, num_nodes):
    """Dense PyG gcn_norm: directed edges as given (message src -> dst),
    self loops added, deg = in-degree row sums, A_hat = D^-1/2 (A+I) D^-1/2."""
    src, dst = edge_index[0], edge_index[1]
    adj = jnp.zeros((num_nodes, num_nodes), jnp.float32)
    adj = adj.at[dst, src].set(1.0)
    adj = jnp.maximum(adj, jnp.eye(num_nodes, dtype=jnp.float32))
    deg = jnp.sum(adj, axis=1)          # >= 1 thanks to self loops
    dinv = jax.lax.rsqrt(deg)
    return adj * dinv[:, None] * dinv[None, :]


# ----------------------------------------------------------------------------
# Forward pass
# ----------------------------------------------------------------------------

def mvge1_forward(x_self, x_neighbor, edge_index, params, dims):
    n = x_self.shape[0]
    hp, csp, cap = dims["hp"], dims["csp"], dims["cap"]
    bf = jnp.bfloat16

    # Node-count padding and tile selection (all tiles divide np_).
    np_ = _round_up(max(n, 256), 256)
    tm = 256                                   # output-row tile (MXU-aligned)
    tk = 512 if np_ % 512 == 0 else 256        # A_hat reduction tile
    tn = 512 if np_ % 512 == 0 else 256        # decoder output-column tile

    xs = _pad2(x_self.astype(jnp.float32), np_, csp).astype(bf)
    xn = _pad2(x_neighbor.astype(jnp.float32), np_, cap).astype(bf)
    a_hat = _pad2(gcn_norm_adj(edge_index, n), np_, np_).astype(bf)

    # --- Stage 1: per-node self path (l1) + GCN1 feature transform (h1) -----
    l1, h1 = pl.pallas_call(
        _enc_self_kernel,
        grid=(np_ // tm,),
        in_specs=[
            pl.BlockSpec((tm, csp), lambda i: (i, 0)),        # xs
            pl.BlockSpec((tm, cap), lambda i: (i, 0)),        # xn
            pl.BlockSpec((csp, 2 * hp), lambda i: (0, 0)),    # w1 (resident)
            pl.BlockSpec((1, 2 * hp), lambda i: (0, 0)),      # b1
            pl.BlockSpec((csp, hp), lambda i: (0, 0)),        # w2a
            pl.BlockSpec((2 * hp, hp), lambda i: (0, 0)),     # w2b
            pl.BlockSpec((1, hp), lambda i: (0, 0)),          # b2
            pl.BlockSpec((cap, 2 * hp), lambda i: (0, 0)),    # wg1
        ],
        out_specs=[
            pl.BlockSpec((tm, hp), lambda i: (i, 0)),         # l1
            pl.BlockSpec((tm, 2 * hp), lambda i: (i, 0)),     # h1
        ],
        out_shape=[
            jax.ShapeDtypeStruct((np_, hp), bf),
            jax.ShapeDtypeStruct((np_, 2 * hp), bf),
        ],
        compiler_params=pltpu.CompilerParams(
            dimension_semantics=("parallel",),
            vmem_limit_bytes=VMEM_LIMIT),
    )(xs, xn, params["w1"], params["b1"], params["w2a"], params["w2b"],
      params["b2"], params["wg1"])

    # --- Stage 2: g1 = A_hat @ h1 + bg1 ; h2 = g1 @ wg2 ---------------------
    g1, h2 = pl.pallas_call(
        _gcn_agg1_kernel,
        grid=(np_ // tm, np_ // tk),
        in_specs=[
            pl.BlockSpec((tm, tk), lambda i, k: (i, k)),       # A_hat
            pl.BlockSpec((tk, 2 * hp), lambda i, k: (k, 0)),   # h1
            pl.BlockSpec((1, 2 * hp), lambda i, k: (0, 0)),    # bg1
            pl.BlockSpec((2 * hp, hp), lambda i, k: (0, 0)),   # wg2
        ],
        out_specs=[
            pl.BlockSpec((tm, 2 * hp), lambda i, k: (i, 0)),   # g1
            pl.BlockSpec((tm, hp), lambda i, k: (i, 0)),       # h2
        ],
        out_shape=[
            jax.ShapeDtypeStruct((np_, 2 * hp), bf),
            jax.ShapeDtypeStruct((np_, hp), bf),
        ],
        scratch_shapes=[pltpu.VMEM((tm, 2 * hp), jnp.float32)],
        compiler_params=pltpu.CompilerParams(
            dimension_semantics=("parallel", "arbitrary"),
            vmem_limit_bytes=VMEM_LIMIT),
    )(a_hat, h1, params["bg1"], params["wg2"])

    # --- Stage 3: g2 = A_hat @ h2 + bg2 ; x2 = linear_out ; z = [l1|x2] -----
    z = pl.pallas_call(
        _gcn_agg2_kernel,
        grid=(np_ // tm, np_ // tk),
        in_specs=[
            pl.BlockSpec((tm, tk), lambda i, k: (i, k)),       # A_hat
            pl.BlockSpec((tk, hp), lambda i, k: (k, 0)),       # h2
            pl.BlockSpec((tm, cap), lambda i, k: (i, 0)),      # xn
            pl.BlockSpec((tm, 2 * hp), lambda i, k: (i, 0)),   # g1
            pl.BlockSpec((tm, hp), lambda i, k: (i, 0)),       # l1
            pl.BlockSpec((1, hp), lambda i, k: (0, 0)),        # bg2
            pl.BlockSpec((cap, hp), lambda i, k: (0, 0)),      # w3a
            pl.BlockSpec((2 * hp, hp), lambda i, k: (0, 0)),   # w3b
            pl.BlockSpec((hp, hp), lambda i, k: (0, 0)),       # w3c
            pl.BlockSpec((1, hp), lambda i, k: (0, 0)),        # b3
        ],
        out_specs=pl.BlockSpec((tm, 2 * hp), lambda i, k: (i, 0)),
        out_shape=jax.ShapeDtypeStruct((np_, 2 * hp), bf),
        scratch_shapes=[pltpu.VMEM((tm, hp), jnp.float32)],
        compiler_params=pltpu.CompilerParams(
            dimension_semantics=("parallel", "arbitrary"),
            vmem_limit_bytes=VMEM_LIMIT),
    )(a_hat, h2, xn, g1, l1, params["bg2"], params["w3a"], params["w3b"],
      params["w3c"], params["b3"])

    # --- Stage 4: decoder adj = sigmoid(z @ z.T), tiled over (i, j) ---------
    adj = pl.pallas_call(
        _decoder_kernel,
        grid=(np_ // tm, np_ // tn),
        in_specs=[
            pl.BlockSpec((tm, 2 * hp), lambda i, j: (i, 0)),   # z rows
            pl.BlockSpec((tn, 2 * hp), lambda i, j: (j, 0)),   # z cols
        ],
        out_specs=pl.BlockSpec((tm, tn), lambda i, j: (i, j)),
        out_shape=jax.ShapeDtypeStruct((np_, np_), jnp.float32),
        compiler_params=pltpu.CompilerParams(
            dimension_semantics=("parallel", "parallel"),
            vmem_limit_bytes=VMEM_LIMIT),
    )(z, z)

    return adj[:n, :n]


# Pure-JAX reference of the original PyTorch forward (f32, unpadded).
def mvge1_reference(x_self, x_neighbor, edge_index, raw):
    a = gcn_norm_adj(edge_index, x_self.shape[0])
    l1a = jax.nn.relu(x_self @ raw["w1"] + raw["b1"])
    l1 = jnp.concatenate([x_self, l1a], 1) @ raw["w2"] + raw["b2"]
    g1 = a @ (x_neighbor @ raw["wg1"]) + raw["bg1"]
    g2 = a @ (g1 @ raw["wg2"]) + raw["bg2"]
    x2 = jnp.concatenate([x_neighbor, g1, g2], 1) @ raw["w3"] + raw["b3"]
    z = jnp.concatenate([l1, x2], 1)
    return jax.nn.sigmoid(z @ z.T)


if __name__ == "__main__":
    N, C_SELF, C_AGG, H = 16, 8, 12, 16

    key = jax.random.PRNGKey(0)
    k_xs, k_xn, k_params = jax.random.split(key, 3)

    x_self = jax.random.uniform(k_xs, (N, C_SELF), jnp.float32)
    x_neighbor = jax.random.uniform(k_xn, (N, C_AGG), jnp.float32)

    # Deterministic directed ring graph as the (global) pos_edge_index.
    src = jnp.arange(N, dtype=jnp.int32)
    dst = (src + 1) % N
    edge_index = jnp.stack([src, dst], axis=0)     # (2, N)

    raw, params, dims = init_params(k_params, C_SELF, C_AGG, H)

    adj_pred = mvge1_forward(x_self, x_neighbor, edge_index, params, dims)
    adj_pred = jax.block_until_ready(adj_pred)

    assert adj_pred.shape == (N, N)
    assert bool(jnp.all(jnp.isfinite(adj_pred)))
    assert bool(jnp.all((adj_pred >= 0.0) & (adj_pred <= 1.0)))

    # Cross-check against the f32 reference (loose tol: bf16 matmul operands).
    adj_ref = mvge1_reference(x_self, x_neighbor, edge_index, raw)
    max_err = float(jnp.max(jnp.abs(adj_pred - adj_ref)))
    assert max_err < 0.08, f"max abs error vs reference: {max_err}"

    print("KERNEL_OK")
</pallas_src>

<mosaic_0001>
module attributes {stable_mosaic.version = 11 : i64} {
  func.func @_enc_self_kernel(%arg0: i32, %arg1: memref<256x128xbf16, #tpu.memory_space<vmem>>, %arg2: memref<256x128xbf16, #tpu.memory_space<vmem>>, %arg3: memref<128x256xbf16, #tpu.memory_space<vmem>>, %arg4: memref<1x256xf32, #tpu.memory_space<vmem>>, %arg5: memref<128x128xbf16, #tpu.memory_space<vmem>>, %arg6: memref<256x128xbf16, #tpu.memory_space<vmem>>, %arg7: memref<1x128xf32, #tpu.memory_space<vmem>>, %arg8: memref<128x256xbf16, #tpu.memory_space<vmem>>, %arg9: memref<256x128xbf16, #tpu.memory_space<vmem>>, %arg10: memref<256x256xbf16, #tpu.memory_space<vmem>>) attributes {dimension_semantics = [#tpu.dimension_semantics<parallel>], iteration_bounds = array<i64: 1>, scalar_prefetch = 0 : i64, scratch_operands = 0 : i64, tpu.core_type = #tpu.core_type<tc>, window_params = [{transform_indices = @transform_0, window_bounds = array<i64: 256, 128>}, {transform_indices = @transform_1, window_bounds = array<i64: 256, 128>}, {pipeline_mode = #tpu.pipeline_mode<synchronous>, transform_indices = @transform_2, window_bounds = array<i64: 128, 256>}, {pipeline_mode = #tpu.pipeline_mode<synchronous>, transform_indices = @transform_3, window_bounds = array<i64: 1, 256>}, {pipeline_mode = #tpu.pipeline_mode<synchronous>, transform_indices = @transform_4, window_bounds = array<i64: 128, 128>}, {pipeline_mode = #tpu.pipeline_mode<synchronous>, transform_indices = @transform_5, window_bounds = array<i64: 256, 128>}, {pipeline_mode = #tpu.pipeline_mode<synchronous>, transform_indices = @transform_6, window_bounds = array<i64: 1, 128>}, {pipeline_mode = #tpu.pipeline_mode<synchronous>, transform_indices = @transform_7, window_bounds = array<i64: 128, 256>}, {transform_indices = @transform_8, window_bounds = array<i64: 256, 128>}, {transform_indices = @transform_9, window_bounds = array<i64: 256, 256>}]} {
    %c0 = arith.constant 0 : index
    %c0_0 = arith.constant 0 : index
    %0 = vector.load %arg1[%c0, %c0_0] : memref<256x128xbf16, #tpu.memory_space<vmem>>, vector<256x128xbf16>
    %c0_1 = arith.constant 0 : index
    %c0_2 = arith.constant 0 : index
    %1 = vector.load %arg3[%c0_1, %c0_2] : memref<128x256xbf16, #tpu.memory_space<vmem>>, vector<128x256xbf16>
    %cst = arith.constant dense<0.000000e+00> : vector<256x256xf32>
    %2 = tpu.matmul %0, %1, %cst {dimension_numbers = #tpu.dot_dimension_numbers<[1], [0], [0], [1], [0, 0, 1, 1], [], []>} : vector<256x128xbf16>, vector<128x256xbf16>, vector<256x256xf32> -> vector<256x256xf32>
    %c0_3 = arith.constant 0 : index
    %c0_4 = arith.constant 0 : index
    %3 = vector.load %arg4[%c0_3, %c0_4] : memref<1x256xf32, #tpu.memory_space<vmem>>, vector<1x256xf32>
    %4 = vector.broadcast %3 : vector<1x256xf32> to vector<256x256xf32>
    %5 = arith.addf %2, %4 : vector<256x256xf32>
    %cst_5 = arith.constant 0.000000e+00 : f32
    %6 = vector.broadcast %cst_5 : f32 to vector<256x256xf32>
    %7 = arith.maximumf %5, %6 : vector<256x256xf32>
    %c0_6 = arith.constant 0 : index
    %c0_7 = arith.constant 0 : index
    %8 = vector.load %arg5[%c0_6, %c0_7] : memref<128x128xbf16, #tpu.memory_space<vmem>>, vector<128x128xbf16>
    %cst_8 = arith.constant dense<0.000000e+00> : vector<256x128xf32>
    %9 = tpu.matmul %0, %8, %cst_8 {dimension_numbers = #tpu.dot_dimension_numbers<[1], [0], [0], [1], [0, 0, 1, 1], [], []>} : vector<256x128xbf16>, vector<128x128xbf16>, vector<256x128xf32> -> vector<256x128xf32>
    %10 = arith.truncf %7 : vector<256x256xf32> to vector<256x256xbf16>
    %c0_9 = arith.constant 0 : index
    %c0_10 = arith.constant 0 : index
    %11 = vector.load %arg6[%c0_9, %c0_10] : memref<256x128xbf16, #tpu.memory_space<vmem>>, vector<256x128xbf16>
    %cst_11 = arith.constant dense<0.000000e+00> : vector<256x128xf32>
    %12 = tpu.matmul %10, %11, %cst_11 {dimension_numbers = #tpu.dot_dimension_numbers<[1], [0], [0], [1], [0, 0, 1, 1], [], []>} : vector<256x256xbf16>, vector<256x128xbf16>, vector<256x128xf32> -> vector<256x128xf32>
    %13 = arith.addf %9, %12 : vector<256x128xf32>
    %c0_12 = arith.constant 0 : index
    %c0_13 = arith.constant 0 : index
    %14 = vector.load %arg7[%c0_12, %c0_13] : memref<1x128xf32, #tpu.memory_space<vmem>>, vector<1x128xf32>
    %15 = vector.broadcast %14 : vector<1x128xf32> to vector<256x128xf32>
    %16 = arith.addf %13, %15 : vector<256x128xf32>
    %17 = arith.truncf %16 : vector<256x128xf32> to vector<256x128xbf16>
    %c0_14 = arith.constant 0 : index
    %c0_15 = arith.constant 0 : index
    %18 = vector.load %arg9[%c0_14, %c0_15] : memref<256x128xbf16, #tpu.memory_space<vmem>>, vector<256x128xbf16>
    tpu.vector_store %arg9[%c0_14, %c0_15], %17 {strides = array<i32>} : memref<256x128xbf16, #tpu.memory_space<vmem>>, vector<256x128xbf16>,
    %c0_16 = arith.constant 0 : index
    %c0_17 = arith.constant 0 : index
    %19 = vector.load %arg2[%c0_16, %c0_17] : memref<256x128xbf16, #tpu.memory_space<vmem>>, vector<256x128xbf16>
    %c0_18 = arith.constant 0 : index
    %c0_19 = arith.constant 0 : index
    %20 = vector.load %arg8[%c0_18, %c0_19] : memref<128x256xbf16, #tpu.memory_space<vmem>>, vector<128x256xbf16>
    %cst_20 = arith.constant dense<0.000000e+00> : vector<256x256xf32>
    %21 = tpu.matmul %19, %20, %cst_20 {dimension_numbers = #tpu.dot_dimension_numbers<[1], [0], [0], [1], [0, 0, 1, 1], [], []>} : vector<256x128xbf16>, vector<128x256xbf16>, vector<256x256xf32> -> vector<256x256xf32>
    %22 = arith.truncf %21 : vector<256x256xf32> to vector<256x256xbf16>
    %c0_21 = arith.constant 0 : index
    %c0_22 = arith.constant 0 : index
    %23 = vector.load %arg10[%c0_21, %c0_22] : memref<256x256xbf16, #tpu.memory_space<vmem>>, vector<256x256xbf16>
    tpu.vector_store %arg10[%c0_21, %c0_22], %22 {strides = array<i32>} : memref<256x256xbf16, #tpu.memory_space<vmem>>, vector<256x256xbf16>,
    return
  }
  func.func @transform_0(%arg0: i32) -> (i32, i32) {
    %c0_i32 = arith.constant 0 : i32
    %c0_i32_0 = arith.constant 0 : i32
    return %arg0, %c0_i32 : i32, i32
  }
  func.func @transform_1(%arg0: i32) -> (i32, i32) {
    %c0_i32 = arith.constant 0 : i32
    %c0_i32_0 = arith.constant 0 : i32
    return %arg0, %c0_i32 : i32, i32
  }
  func.func @transform_2(%arg0: i32) -> (i32, i32) {
    %c0_i32 = arith.constant 0 : i32
    %c0_i32_0 = arith.constant 0 : i32
    %c0_i32_1 = arith.constant 0 : i32
    return %c0_i32, %c0_i32_0 : i32, i32
  }
  func.func @transform_3(%arg0: i32) -> (i32, i32) {
    %c0_i32 = arith.constant 0 : i32
    %c0_i32_0 = arith.constant 0 : i32
    %c0_i32_1 = arith.constant 0 : i32
    return %c0_i32, %c0_i32_0 : i32, i32
  }
  func.func @transform_4(%arg0: i32) -> (i32, i32) {
    %c0_i32 = arith.constant 0 : i32
    %c0_i32_0 = arith.constant 0 : i32
    %c0_i32_1 = arith.constant 0 : i32
    return %c0_i32, %c0_i32_0 : i32, i32
  }
  func.func @transform_5(%arg0: i32) -> (i32, i32) {
    %c0_i32 = arith.constant 0 : i32
    %c0_i32_0 = arith.constant 0 : i32
    %c0_i32_1 = arith.constant 0 : i32
    return %c0_i32, %c0_i32_0 : i32, i32
  }
  func.func @transform_6(%arg0: i32) -> (i32, i32) {
    %c0_i32 = arith.constant 0 : i32
    %c0_i32_0 = arith.constant 0 : i32
    %c0_i32_1 = arith.constant 0 : i32
    return %c0_i32, %c0_i32_0 : i32, i32
  }
  func.func @transform_7(%arg0: i32) -> (i32, i32) {
    %c0_i32 = arith.constant 0 : i32
    %c0_i32_0 = arith.constant 0 : i32
    %c0_i32_1 = arith.constant 0 : i32
    return %c0_i32, %c0_i32_0 : i32, i32
  }
  func.func @transform_8(%arg0: i32) -> (i32, i32) {
    %c0_i32 = arith.constant 0 : i32
    %c0_i32_0 = arith.constant 0 : i32
    return %arg0, %c0_i32 : i32, i32
  }
  func.func @transform_9(%arg0: i32) -> (i32, i32) {
    %c0_i32 = arith.constant 0 : i32
    %c0_i32_0 = arith.constant 0 : i32
    return %arg0, %c0_i32 : i32, i32
  }
}

</mosaic_0001>

<llo_original>
// kernel: tpu_custom_call.1
$region0: #{tpu_custom_call.1}
  #allocation0 [shape = 'u32[]', space=smem, size = 0x4, offset = 0x4, fixed_abs, tag = 'smem constant byte address 0x4 - core index']
  #allocation1 [shape = 'u32[144,128]{1,0:T(1,128)}', space=vmem, size = 0x12000, scoped, tag = 'internal scratch']
  %s0 = inlined_call_operand.hbm [shape: bf16[256,128], index: 0, kind: input, shape index: {}]
  %s1 = inlined_call_operand.hbm [shape: bf16[256,128], index: 1, kind: input, shape index: {}]
  %s2 = inlined_call_operand.hbm [shape: bf16[128,256], index: 2, kind: input, shape index: {}]
  %s3 = inlined_call_operand.vmem [shape: f32[1,256], index: 3, kind: input, shape index: {}]
  %s4 = inlined_call_operand.hbm [shape: bf16[128,128], index: 4, kind: input, shape index: {}]
  %s5 = inlined_call_operand.hbm [shape: bf16[256,128], index: 5, kind: input, shape index: {}]
  %s6 = inlined_call_operand.vmem [shape: f32[1,128], index: 6, kind: input, shape index: {}]
  %s7 = inlined_call_operand.hbm [shape: bf16[128,256], index: 7, kind: input, shape index: {}]
  %s8 = inlined_call_operand.hbm [shape: bf16[256,128], index: 8, kind: output, shape index: {0}]
  %s9 = inlined_call_operand.hbm [shape: bf16[256,256], index: 9, kind: output, shape index: {1}]
  %10 = xla_tuple %s8, %s9
  %s11 = sld [smem:[#allocation0]]
  $region74: #{tpu_custom_call.1} parent=0
    _
  %s13 = ssub.s32 1, %s11
  %s14 = scalar_select 0, %s13, %s11
  $region1: #{tpu_custom_call.1} parent=0
    #allocation2 [shape = 'u8[65536]{0}', space=vmem, size = 0x10000, scoped, tag = 'input window, operand 0, single buffered']
    #allocation3 [shape = 's32[1]{0}', space=sflag, size = 0x4, scoped, tag = 'scoped memory for tpu_custom_call.1']
    #allocation4 [shape = 's32[1]{0}', space=sflag, size = 0x4, scoped, tag = 'scoped memory for tpu_custom_call.1']
    #allocation5 [shape = 'u8[65536]{0}', space=vmem, size = 0x10000, scoped, tag = 'input window, operand 1, single buffered']
    #allocation6 [shape = 's32[1]{0}', space=sflag, size = 0x4, scoped, tag = 'scoped memory for tpu_custom_call.1']
    #allocation7 [shape = 'u8[65536]{0}', space=vmem, size = 0x10000, scoped, tag = 'input window, operand 2, single buffered']
    #allocation8 [shape = 'u8[32768]{0}', space=vmem, size = 0x8000, scoped, tag = 'input window, operand 4, single buffered']
    #allocation9 [shape = 's32[1]{0}', space=sflag, size = 0x4, scoped, tag = 'scoped memory for tpu_custom_call.1']
    #allocation10 [shape = 'u8[65536]{0}', space=vmem, size = 0x10000, scoped, tag = 'input window, operand 5, single buffered']
    #allocation11 [shape = 'u8[65536]{0}', space=vmem, size = 0x10000, scoped, tag = 'input window, operand 7, single buffered']
    #allocation12 [shape = 's32[1]{0}', space=sflag, size = 0x4, scoped, tag = 'scoped memory for tpu_custom_call.1']
    #allocation13 [shape = 'u8[65536]{0}', space=vmem, size = 0x10000, scoped, tag = 'output window, operand 0, single buffered']
    #allocation14 [shape = 'u8[131072]{0}', space=vmem, size = 0x20000, scoped, tag = 'output window, operand 1, single buffered']
    #allocation15 [shape = 's32[1]{0}', space=sflag, size = 0x4, scoped, tag = 'scoped memory for tpu_custom_call.1']
    %15 = vsyncpa [#allocation3], 0
    %16 = vsyncpa [#allocation6], 0
    %17 = vsyncpa [#allocation9], 0
    %18 = vsyncpa [#allocation12], 0
    %19 = vsyncpa [#allocation4], 0
    %20 = vsyncpa [#allocation15], 0
    // Predicated region
    $region2: #{tpu_custom_call.1} parent=1 // pred_check
      _
    $region3: #{tpu_custom_call.1} parent=1 // pred_check_branch
      %22 = sbr.rel (0) target = $region5
    $region4: #{tpu_custom_call.1} parent=1 // pred_region
      %s24 = ssub.s32 2048, 2048
      %25 = vsyncadd [#allocation3], %s24
      %s26 = sshll.u32 [#allocation2], 4
      %s27 = int_to_ptr.vmem [resolvable:$true] %s26
      %32 = dma.hbm_to_vmem [thread:$0]  %s0, 2048, %s27, [#allocation3], 64, 64, 4
    $region5: #{tpu_custom_call.1} parent=1 // pred_fallthru
      _
    // Predicated region
    $region6: #{tpu_custom_call.1} parent=1 // pred_check
      _
    $region7: #{tpu_custom_call.1} parent=1 // pred_check_branch
      %34 = sbr.rel (0) target = $region9
    $region8: #{tpu_custom_call.1} parent=1 // pred_region
      %s36 = ssub.s32 2048, 2048
      %37 = vsyncadd [#allocation6], %s36
      %s38 = sshll.u32 [#allocation5], 4
      %s39 = int_to_ptr.vmem [resolvable:$true] %s38
      %44 = dma.hbm_to_vmem [thread:$0]  %s1, 2048, %s39, [#allocation6], 64, 64, 4
    $region9: #{tpu_custom_call.1} parent=1 // pred_fallthru
      _
    // Predicated region
    $region10: #{tpu_custom_call.1} parent=1 // pred_check
      _
    $region11: #{tpu_custom_call.1} parent=1 // pred_check_branch
      %46 = sbr.rel (0) target = $region13
    $region12: #{tpu_custom_call.1} parent=1 // pred_region
      %s48 = ssub.s32 2048, 2048
      %49 = vsyncadd [#allocation6], %s48
      %s50 = sshll.u32 [#allocation7], 4
      %s51 = int_to_ptr.vmem [resolvable:$true] %s50
      %56 = dma.hbm_to_vmem [thread:$0]  %s2, 2048, %s51, [#allocation6], 128, 128, 8
    $region13: #{tpu_custom_call.1} parent=1 // pred_fallthru
      _
    // Predicated region
    $region14: #{tpu_custom_call.1} parent=1 // pred_check
      _
    $region15: #{tpu_custom_call.1} parent=1 // pred_check_branch
      %58 = sbr.rel (0) target = $region17
    $region16: #{tpu_custom_call.1} parent=1 // pred_region
      _
    $region17: #{tpu_custom_call.1} parent=1 // pred_fallthru
      _
    // Predicated region
    $region18: #{tpu_custom_call.1} parent=1 // pred_check
      _
    $region19: #{tpu_custom_call.1} parent=1 // pred_check_branch
      %60 = sbr.rel (0) target = $region21
    $region20: #{tpu_custom_call.1} parent=1 // pred_region
      %s62 = ssub.s32 1024, 1024
      %63 = vsyncadd [#allocation9], %s62
      %s64 = sshll.u32 [#allocation8], 4
      %s65 = int_to_ptr.vmem [resolvable:$true] %s64
      %70 = dma.hbm_to_vmem [thread:$0]  %s4, 1024, %s65, [#allocation9], 64, 64, 4
    $region21: #{tpu_custom_call.1} parent=1 // pred_fallthru
      _
    // Predicated region
    $region22: #{tpu_custom_call.1} parent=1 // pred_check
      _
    $region23: #{tpu_custom_call.1} parent=1 // pred_check_branch
      %72 = sbr.rel (0) target = $region25
    $region24: #{tpu_custom_call.1} parent=1 // pred_region
      %s74 = ssub.s32 2048, 2048
      %75 = vsyncadd [#allocation9], %s74
      %s76 = sshll.u32 [#allocation10], 4
      %s77 = int_to_ptr.vmem [resolvable:$true] %s76
      %82 = dma.hbm_to_vmem [thread:$0]  %s5, 2048, %s77, [#allocation9], 64, 64, 4
    $region25: #{tpu_custom_call.1} parent=1 // pred_fallthru
      _
    // Predicated region
    $region26: #{tpu_custom_call.1} parent=1 // pred_check
      _
    $region27: #{tpu_custom_call.1} parent=1 // pred_check_branch
      %84 = sbr.rel (0) target = $region29
    $region28: #{tpu_custom_call.1} parent=1 // pred_region
      _
    $region29: #{tpu_custom_call.1} parent=1 // pred_fallthru
      _
    // Predicated region
    $region30: #{tpu_custom_call.1} parent=1 // pred_check
      _
    $region31: #{tpu_custom_call.1} parent=1 // pred_check_branch
      %86 = sbr.rel (0) target = $region33
    $region32: #{tpu_custom_call.1} parent=1 // pred_region
      %s88 = ssub.s32 2048, 2048
      %89 = vsyncadd [#allocation12], %s88
      %s90 = sshll.u32 [#allocation11], 4
      %s91 = int_to_ptr.vmem [resolvable:$true] %s90
      %96 = dma.hbm_to_vmem [thread:$0]  %s7, 2048, %s91, [#allocation12], 128, 128, 8
    $region33: #{tpu_custom_call.1} parent=1 // pred_fallthru
      _
    // Predicated region
    $region34: #{tpu_custom_call.1} parent=1 // pred_check
      _
    $region35: #{tpu_custom_call.1} parent=1 // pred_check_branch
      %98 = sbr.rel (0) target = $region37
    $region36: #{tpu_custom_call.1} parent=1 // pred_region
      %99 = dma.done [#allocation3], 2048
    $region37: #{tpu_custom_call.1} parent=1 // pred_fallthru
      _
    // Predicated region
    $region38: #{tpu_custom_call.1} parent=1 // pred_check
      _
    $region39: #{tpu_custom_call.1} parent=1 // pred_check_branch
      %101 = sbr.rel (0) target = $region41
    $region40: #{tpu_custom_call.1} parent=1 // pred_region
      %102 = dma.done [#allocation6], 2048
    $region41: #{tpu_custom_call.1} parent=1 // pred_fallthru
      _
    // Predicated region
    $region42: #{tpu_custom_call.1} parent=1 // pred_check
      _
    $region43: #{tpu_custom_call.1} parent=1 // pred_check_branch
      %104 = sbr.rel (0) target = $region45
    $region44: #{tpu_custom_call.1} parent=1 // pred_region
      %105 = dma.done [#allocation6], 2048
    $region45: #{tpu_custom_call.1} parent=1 // pred_fallthru
      _
    // Predicated region
    $region46: #{tpu_custom_call.1} parent=1 // pred_check
      _
    $region47: #{tpu_custom_call.1} parent=1 // pred_check_branch
      %107 = sbr.rel (0) target = $region49
    $region48: #{tpu_custom_call.1} parent=1 // pred_region
      %108 = dma.done [#allocation9], 1024
    $region49: #{tpu_custom_call.1} parent=1 // pred_fallthru
      _
    // Predicated region
    $region50: #{tpu_custom_call.1} parent=1 // pred_check
      _
    $region51: #{tpu_custom_call.1} parent=1 // pred_check_branch
      %110 = sbr.rel (0) target = $region53
    $region52: #{tpu_custom_call.1} parent=1 // pred_region
      %111 = dma.done [#allocation9], 2048
    $region53: #{tpu_custom_call.1} parent=1 // pred_fallthru
      _
    // Predicated region
    $region54: #{tpu_custom_call.1} parent=1 // pred_check
      _
    $region55: #{tpu_custom_call.1} parent=1 // pred_check_branch
      %113 = sbr.rel (0) target = $region57
    $region56: #{tpu_custom_call.1} parent=1 // pred_region
      %114 = dma.done [#allocation12], 2048
    $region57: #{tpu_custom_call.1} parent=1 // pred_fallthru
      _
    %v116 = vld [vmem:[#allocation2] sm:$0xf]
    %v117 = vld [vmem:[#allocation2 + $0x4] sm:$0xf]
    %v118 = vld [vmem:[#allocation2 + $0x8] sm:$0xf]
    %v119 = vld [vmem:[#allocation2 + $0xc] sm:$0xf]
    %v120 = vld [vmem:[#allocation2 + $0x10] sm:$0xf]
    %v121 = vld [vmem:[#allocation2 + $0x14] sm:$0xf]
    %v122 = vld [vmem:[#allocation2 + $0x18] sm:$0xf]
    %v123 = vld [vmem:[#allocation2 + $0x1c] sm:$0xf]
    %v124 = vld [vmem:[#allocation2 + $0x20] sm:$0xf]
    %v125 = vld [vmem:[#allocation2 + $0x24] sm:$0xf]
    %v126 = vld [vmem:[#allocation2 + $0x28] sm:$0xf]
    %v127 = vld [vmem:[#allocation2 + $0x2c] sm:$0xf]
    %v128 = vld [vmem:[#allocation2 + $0x30] sm:$0xf]
    %v129 = vld [vmem:[#allocation2 + $0x34] sm:$0xf]
    %v130 = vld [vmem:[#allocation2 + $0x38] sm:$0xf]
    %v131 = vld [vmem:[#allocation2 + $0x3c] sm:$0xf]
    %v132 = vld [vmem:[#allocation2 + $0x40] sm:$0xf]
    %v133 = vld [vmem:[#allocation2 + $0x44] sm:$0xf]
    %v134 = vld [vmem:[#allocation2 + $0x48] sm:$0xf]
    %v135 = vld [vmem:[#allocation2 + $0x4c] sm:$0xf]
    %v136 = vld [vmem:[#allocation2 + $0x50] sm:$0xf]
    %v137 = vld [vmem:[#allocation2 + $0x54] sm:$0xf]
    %v138 = vld [vmem:[#allocation2 + $0x58] sm:$0xf]
    %v139 = vld [vmem:[#allocation2 + $0x5c] sm:$0xf]
    %v140 = vld [vmem:[#allocation2 + $0x60] sm:$0xf]
    %v141 = vld [vmem:[#allocation2 + $0x64] sm:$0xf]
    %v142 = vld [vmem:[#allocation2 + $0x68] sm:$0xf]
    %v143 = vld [vmem:[#allocation2 + $0x6c] sm:$0xf]
    %v144 = vld [vmem:[#allocation2 + $0x70] sm:$0xf]
    %v145 = vld [vmem:[#allocation2 + $0x74] sm:$0xf]
    %v146 = vld [vmem:[#allocation2 + $0x78] sm:$0xf]
    %v147 = vld [vmem:[#allocation2 + $0x7c] sm:$0xf]
    %v148 = vld [vmem:[#allocation7] sm:$0xff]
    %v149 = vld [vmem:[#allocation7 + $0x8] sm:$0xff]
    %v150 = vld [vmem:[#allocation7 + $0x10] sm:$0xff]
    %v151 = vld [vmem:[#allocation7 + $0x18] sm:$0xff]
    %v152 = vld [vmem:[#allocation7 + $0x20] sm:$0xff]
    %v153 = vld [vmem:[#allocation7 + $0x28] sm:$0xff]
    %v154 = vld [vmem:[#allocation7 + $0x30] sm:$0xff]
    %v155 = vld [vmem:[#allocation7 + $0x38] sm:$0xff]
    %v156 = vld [vmem:[#allocation7 + $0x40] sm:$0xff]
    %v157 = vld [vmem:[#allocation7 + $0x48] sm:$0xff]
    %v158 = vld [vmem:[#allocation7 + $0x50] sm:$0xff]
    %v159 = vld [vmem:[#allocation7 + $0x58] sm:$0xff]
    %v160 = vld [vmem:[#allocation7 + $0x60] sm:$0xff]
    %v161 = vld [vmem:[#allocation7 + $0x68] sm:$0xff]
    %v162 = vld [vmem:[#allocation7 + $0x70] sm:$0xff]
    %v163 = vld [vmem:[#allocation7 + $0x78] sm:$0xff]
    %v164 = vld [vmem:[%s3] sm:$0x3]
    %v166 = vlaneseq
    %v167 = vshrl.u32 %v166, 7
    %v168 = vsub.s32 0, %v167
    %v169 = vrot.slane %v164, %v168
    %v170 = vlaneseq
    %v171 = vshrl.u32 %v170, 7
    %v172 = vsub.s32 1, %v171
    %v173 = vrot.slane %v164, %v172
    %v208 = vunpack.c.l.b16 %v116
    %v209 = vunpack.c.l.b16 %v117
    %v210 = vunpack.c.l.b16 %v118
    %v211 = vunpack.c.l.b16 %v119
    %v212 = vunpack.c.l.b16 %v120
    %v213 = vunpack.c.l.b16 %v121
    %v214 = vunpack.c.l.b16 %v122
    %v215 = vunpack.c.l.b16 %v123
    %v216 = vunpack.c.l.b16 %v124
    %v217 = vunpack.c.l.b16 %v125
    %v218 = vunpack.c.l.b16 %v126
    %v219 = vunpack.c.l.b16 %v127
    %v220 = vunpack.c.l.b16 %v128
    %v221 = vunpack.c.l.b16 %v129
    %v222 = vunpack.c.l.b16 %v130
    %v223 = vunpack.c.l.b16 %v131
    %v224 = vunpack.c.l.b16 %v132
    %v225 = vunpack.c.l.b16 %v133
    %v226 = vunpack.c.l.b16 %v134
    %v227 = vunpack.c.l.b16 %v135
    %v228 = vunpack.c.l.b16 %v136
    %v229 = vunpack.c.l.b16 %v137
    %v230 = vunpack.c.l.b16 %v138
    %v231 = vunpack.c.l.b16 %v139
    %v232 = vunpack.c.l.b16 %v140
    %v233 = vunpack.c.l.b16 %v141
    %v234 = vunpack.c.l.b16 %v142
    %v235 = vunpack.c.l.b16 %v143
    %v236 = vunpack.c.l.b16 %v144
    %v237 = vunpack.c.l.b16 %v145
    %v238 = vunpack.c.l.b16 %v146
    %v239 = vunpack.c.l.b16 %v147
    %v240 = vpack.c.b16 %v209, %v208
    %v241 = vpack.c.b16 %v211, %v210
    %v242 = vpack.c.b16 %v213, %v212
    %v243 = vpack.c.b16 %v215, %v214
    %v244 = vpack.c.b16 %v217, %v216
    %v245 = vpack.c.b16 %v219, %v218
    %v246 = vpack.c.b16 %v221, %v220
    %v247 = vpack.c.b16 %v223, %v222
    %v248 = vpack.c.b16 %v225, %v224
    %v249 = vpack.c.b16 %v227, %v226
    %v250 = vpack.c.b16 %v229, %v228
    %v251 = vpack.c.b16 %v231, %v230
    %v252 = vpack.c.b16 %v233, %v232
    %v253 = vpack.c.b16 %v235, %v234
    %v254 = vpack.c.b16 %v237, %v236
    %v255 = vpack.c.b16 %v239, %v238
    %v288 = vunpack.c.l.b16 %v148
    %v289 = vunpack.c.h.b16 %v148
    %v290 = vunpack.c.l.b16 %v149
    %v291 = vunpack.c.h.b16 %v149
    %v292 = vunpack.c.l.b16 %v150
    %v293 = vunpack.c.h.b16 %v150
    %v294 = vunpack.c.l.b16 %v151
    %v295 = vunpack.c.h.b16 %v151
    %v296 = vunpack.c.l.b16 %v152
    %v297 = vunpack.c.h.b16 %v152
    %v298 = vunpack.c.l.b16 %v153
    %v299 = vunpack.c.h.b16 %v153
    %v300 = vunpack.c.l.b16 %v154
    %v301 = vunpack.c.h.b16 %v154
    %v302 = vunpack.c.l.b16 %v155
    %v303 = vunpack.c.h.b16 %v155
    %v304 = vunpack.c.l.b16 %v156
    %v305 = vunpack.c.h.b16 %v156
    %v306 = vunpack.c.l.b16 %v157
    %v307 = vunpack.c.h.b16 %v157
    %v308 = vunpack.c.l.b16 %v158
    %v309 = vunpack.c.h.b16 %v158
    %v310 = vunpack.c.l.b16 %v159
    %v311 = vunpack.c.h.b16 %v159
    %v312 = vunpack.c.l.b16 %v160
    %v313 = vunpack.c.h.b16 %v160
    %v314 = vunpack.c.l.b16 %v161
    %v315 = vunpack.c.h.b16 %v161
    %v316 = vunpack.c.l.b16 %v162
    %v317 = vunpack.c.h.b16 %v162
    %v318 = vunpack.c.l.b16 %v163
    %v319 = vunpack.c.h.b16 %v163
    %v320 = vpack.c.b16 %v290, %v288
    %v321 = vpack.c.b16 %v291, %v289
    %v322 = vpack.c.b16 %v294, %v292
    %v323 = vpack.c.b16 %v295, %v293
    %v324 = vpack.c.b16 %v298, %v296
    %v325 = vpack.c.b16 %v299, %v297
    %v326 = vpack.c.b16 %v302, %v300
    %v327 = vpack.c.b16 %v303, %v301
    %v328 = vpack.c.b16 %v306, %v304
    %v329 = vpack.c.b16 %v307, %v305
    %v330 = vpack.c.b16 %v310, %v308
    %v331 = vpack.c.b16 %v311, %v309
    %v332 = vpack.c.b16 %v314, %v312
    %v333 = vpack.c.b16 %v315, %v313
    %v334 = vpack.c.b16 %v318, %v316
    %v335 = vpack.c.b16 %v319, %v317
    %352 = vmatprep.subr.bf16.mxu0 %v321
    %353 = vmatpush1.bf16.msra.mxu0 %v320
    %354 = vmatprep.subr.bf16.mxu0 %v323
    %355 = vmatpush1.bf16.msra.mxu0 %v322
    %356 = vmatprep.subr.bf16.mxu0 %v325
    %357 = vmatpush1.bf16.msra.mxu0 %v324
    %358 = vmatprep.subr.bf16.mxu0 %v327
    %359 = vmatpush1.bf16.msra.mxu0 %v326
    %360 = vmatprep.subr.bf16.mxu0 %v329
    %361 = vmatpush1.bf16.msra.mxu0 %v328
    %362 = vmatprep.subr.bf16.mxu0 %v331
    %363 = vmatpush1.bf16.msra.mxu0 %v330
    %364 = vmatprep.subr.bf16.mxu0 %v333
    %365 = vmatpush1.bf16.msra.mxu0 %v332
    %366 = vmatprep.subr.bf16.mxu0 %v335
    %367 = vmatpush1.bf16.msra.mxu0 %v334
    %368 = vmatprep.subr.bf16.mxu0 0
    %369 = vmatpush1.bf16.msra.mxu0 0
    %370 = vmatprep.subr.bf16.mxu0 0
    %371 = vmatpush1.bf16.msra.mxu0 0
    %372 = vmatprep.subr.bf16.mxu0 0
    %373 = vmatpush1.bf16.msra.mxu0 0
    %374 = vmatprep.subr.bf16.mxu0 0
    %375 = vmatpush1.bf16.msra.mxu0 0
    %376 = vmatprep.subr.bf16.mxu0 0
    %377 = vmatpush1.bf16.msra.mxu0 0
    %378 = vmatprep.subr.bf16.mxu0 0
    %379 = vmatpush1.bf16.msra.mxu0 0
    %380 = vmatprep.subr.bf16.mxu0 0
    %381 = vmatpush1.bf16.msra.mxu0 0
    %382 = vmatprep.subr.bf16.mxu0 0
    %383 = vmatpush1.bf16.msra.mxu0 0
    %384 = vmatprep.mubr.bf16.mxu0 0
    %385 = vmatmul.mubr.bf16.gmra.mrb[0].mxu0 %v240
    %v386 = vpop.f32.mrb[0].mxu0
    %v387 = vadd.f32 %v169, %v386
    %v388 = vpop.f32.mrb[0].mxu0
    %v389 = vadd.f32 %v173, %v388
    %v390 = vpop.f32.mrb[0].mxu0
    %v391 = vadd.f32 %v169, %v390
    %v392 = vpop.f32.mrb[0].mxu0
    %v393 = vadd.f32 %v173, %v392
    %394 = vmatprep.mubr.bf16.mxu0 0
    %395 = vmatmul.mubr.bf16.gmra.mrb[0].mxu0 %v241
    %v396 = vpop.f32.mrb[0].mxu0
    %v397 = vadd.f32 %v169, %v396
    %v398 = vpop.f32.mrb[0].mxu0
    %v399 = vadd.f32 %v173, %v398
    %v400 = vpop.f32.mrb[0].mxu0
    %v401 = vadd.f32 %v169, %v400
    %v402 = vpop.f32.mrb[0].mxu0
    %v403 = vadd.f32 %v173, %v402
    %404 = vmatprep.mubr.bf16.mxu0 0
    %405 = vmatmul.mubr.bf16.gmra.mrb[0].mxu0 %v242
    %v406 = vpop.f32.mrb[0].mxu0
    %v407 = vadd.f32 %v169, %v406
    %v408 = vpop.f32.mrb[0].mxu0
    %v409 = vadd.f32 %v173, %v408
    %v410 = vpop.f32.mrb[0].mxu0
    %v411 = vadd.f32 %v169, %v410
    %v412 = vpop.f32.mrb[0].mxu0
    %v413 = vadd.f32 %v173, %v412
    %414 = vmatprep.mubr.bf16.mxu0 0
    %415 = vmatmul.mubr.bf16.gmra.mrb[0].mxu0 %v243
    %v416 = vpop.f32.mrb[0].mxu0
    %v417 = vadd.f32 %v169, %v416
    %v418 = vpop.f32.mrb[0].mxu0
    %v419 = vadd.f32 %v173, %v418
    %v420 = vpop.f32.mrb[0].mxu0
    %v421 = vadd.f32 %v169, %v420
    %v422 = vpop.f32.mrb[0].mxu0
    %v423 = vadd.f32 %v173, %v422
    %424 = vmatprep.mubr.bf16.mxu0 0
    %425 = vmatmul.mubr.bf16.gmra.mrb[0].mxu0 %v244
    %v426 = vpop.f32.mrb[0].mxu0
    %v427 = vadd.f32 %v169, %v426
    %v428 = vpop.f32.mrb[0].mxu0
    %v429 = vadd.f32 %v173, %v428
    %v430 = vpop.f32.mrb[0].mxu0
    %v431 = vadd.f32 %v169, %v430
    %v432 = vpop.f32.mrb[0].mxu0
    %v433 = vadd.f32 %v173, %v432
    %434 = vmatprep.mubr.bf16.mxu0 0
    %435 = vmatmul.mubr.bf16.gmra.mrb[0].mxu0 %v245
    %v436 = vpop.f32.mrb[0].mxu0
    %v437 = vadd.f32 %v169, %v436
    %v438 = vpop.f32.mrb[0].mxu0
    %v439 = vadd.f32 %v173, %v438
    %v440 = vpop.f32.mrb[0].mxu0
    %v441 = vadd.f32 %v169, %v440
    %v442 = vpop.f32.mrb[0].mxu0
    %v443 = vadd.f32 %v173, %v442
    %444 = vmatprep.mubr.bf16.mxu0 0
    %445 = vmatmul.mubr.bf16.gmra.mrb[0].mxu0 %v246
    %v446 = vpop.f32.mrb[0].mxu0
    %v447 = vadd.f32 %v169, %v446
    %v448 = vpop.f32.mrb[0].mxu0
    %v449 = vadd.f32 %v173, %v448
    %v450 = vpop.f32.mrb[0].mxu0
    %v451 = vadd.f32 %v169, %v450
    %v452 = vpop.f32.mrb[0].mxu0
    %v453 = vadd.f32 %v173, %v452
    %454 = vmatprep.mubr.bf16.mxu0 0
    %455 = vmatmul.mubr.bf16.gmra.mrb[0].mxu0 %v247
    %v456 = vpop.f32.mrb[0].mxu0
    %v457 = vadd.f32 %v169, %v456
    %v458 = vpop.f32.mrb[0].mxu0
    %v459 = vadd.f32 %v173, %v458
    %v460 = vpop.f32.mrb[0].mxu0
    %v461 = vadd.f32 %v169, %v460
    %v462 = vpop.f32.mrb[0].mxu0
    %v463 = vadd.f32 %v173, %v462
    %464 = vmatprep.mubr.bf16.mxu0 0
    %465 = vmatmul.mubr.bf16.gmra.mrb[0].mxu0 %v248
    %v466 = vpop.f32.mrb[0].mxu0
    %v467 = vadd.f32 %v169, %v466
    %v468 = vpop.f32.mrb[0].mxu0
    %v469 = vadd.f32 %v173, %v468
    %v470 = vpop.f32.mrb[0].mxu0
    %v471 = vadd.f32 %v169, %v470
    %v472 = vpop.f32.mrb[0].mxu0
    %v473 = vadd.f32 %v173, %v472
    %474 = vmatprep.mubr.bf16.mxu0 0
    %475 = vmatmul.mubr.bf16.gmra.mrb[0].mxu0 %v249
    %v476 = vpop.f32.mrb[0].mxu0
    %v477 = vadd.f32 %v169, %v476
    %v478 = vpop.f32.mrb[0].mxu0
    %v479 = vadd.f32 %v173, %v478
    %v480 = vpop.f32.mrb[0].mxu0
    %v481 = vadd.f32 %v169, %v480
    %v482 = vpop.f32.mrb[0].mxu0
    %v483 = vadd.f32 %v173, %v482
    %484 = vmatprep.mubr.bf16.mxu0 0
    %485 = vmatmul.mubr.bf16.gmra.mrb[0].mxu0 %v250
    %v486 = vpop.f32.mrb[0].mxu0
    %v487 = vadd.f32 %v169, %v486
    %v488 = vpop.f32.mrb[0].mxu0
    %v489 = vadd.f32 %v173, %v488
    %v490 = vpop.f32.mrb[0].mxu0
    %v491 = vadd.f32 %v169, %v490
    %v492 = vpop.f32.mrb[0].mxu0
    %v493 = vadd.f32 %v173, %v492
    %494 = vmatprep.mubr.bf16.mxu0 0
    %495 = vmatmul.mubr.bf16.gmra.mrb[0].mxu0 %v251
    %v496 = vpop.f32.mrb[0].mxu0
    %v497 = vadd.f32 %v169, %v496
    %v498 = vpop.f32.mrb[0].mxu0
    %v499 = vadd.f32 %v173, %v498
    %v500 = vpop.f32.mrb[0].mxu0
    %v501 = vadd.f32 %v169, %v500
    %v502 = vpop.f32.mrb[0].mxu0
    %v503 = vadd.f32 %v173, %v502
    %504 = vmatprep.mubr.bf16.mxu0 0
    %505 = vmatmul.mubr.bf16.gmra.mrb[0].mxu0 %v252
    %v506 = vpop.f32.mrb[0].mxu0
    %v507 = vadd.f32 %v169, %v506
    %v508 = vpop.f32.mrb[0].mxu0
    %v509 = vadd.f32 %v173, %v508
    %v510 = vpop.f32.mrb[0].mxu0
    %v511 = vadd.f32 %v169, %v510
    %v512 = vpop.f32.mrb[0].mxu0
    %v513 = vadd.f32 %v173, %v512
    %514 = vmatprep.mubr.bf16.mxu0 0
    %515 = vmatmul.mubr.bf16.gmra.mrb[0].mxu0 %v253
    %v516 = vpop.f32.mrb[0].mxu0
    %v517 = vadd.f32 %v169, %v516
    %v518 = vpop.f32.mrb[0].mxu0
    %v519 = vadd.f32 %v173, %v518
    %v520 = vpop.f32.mrb[0].mxu0
    %v521 = vadd.f32 %v169, %v520
    %v522 = vpop.f32.mrb[0].mxu0
    %v523 = vadd.f32 %v173, %v522
    %524 = vmatprep.mubr.bf16.mxu0 0
    %525 = vmatmul.mubr.bf16.gmra.mrb[0].mxu0 %v254
    %v526 = vpop.f32.mrb[0].mxu0
    %v527 = vadd.f32 %v169, %v526
    %v528 = vpop.f32.mrb[0].mxu0
    %v529 = vadd.f32 %v173, %v528
    %v530 = vpop.f32.mrb[0].mxu0
    %v531 = vadd.f32 %v169, %v530
    %v532 = vpop.f32.mrb[0].mxu0
    %v533 = vadd.f32 %v173, %v532
    %534 = vmatprep.mubr.bf16.mxu0 0
    %535 = vmatmul.mubr.bf16.gmra.mrb[0].mxu0 %v255
    %v536 = vpop.f32.mrb[0].mxu0
    %v537 = vadd.f32 %v169, %v536
    %v538 = vpop.f32.mrb[0].mxu0
    %v539 = vadd.f32 %v173, %v538
    %v540 = vpop.f32.mrb[0].mxu0
    %v541 = vadd.f32 %v169, %v540
    %v542 = vpop.f32.mrb[0].mxu0
    %v543 = vadd.f32 %v173, %v542
    %544 = vdwg.mxu0
    %v545 = vmax.f32 %v387, 0.0
    %v546 = vmax.f32 %v389, 0.0
    %v547 = vmax.f32 %v391, 0.0
    %v548 = vmax.f32 %v393, 0.0
    %v549 = vmax.f32 %v397, 0.0
    %v550 = vmax.f32 %v399, 0.0
    %v551 = vmax.f32 %v401, 0.0
    %v552 = vmax.f32 %v403, 0.0
    %v553 = vmax.f32 %v407, 0.0
    %v554 = vmax.f32 %v409, 0.0
    %v555 = vmax.f32 %v411, 0.0
    %v556 = vmax.f32 %v413, 0.0
    %v557 = vmax.f32 %v417, 0.0
    %v558 = vmax.f32 %v419, 0.0
    %v559 = vmax.f32 %v421, 0.0
    %v560 = vmax.f32 %v423, 0.0
    %v561 = vmax.f32 %v427, 0.0
    %v562 = vmax.f32 %v429, 0.0
    %v563 = vmax.f32 %v431, 0.0
    %v564 = vmax.f32 %v433, 0.0
    %v565 = vmax.f32 %v437, 0.0
    %v566 = vmax.f32 %v439, 0.0
    %v567 = vmax.f32 %v441, 0.0
    %v568 = vmax.f32 %v443, 0.0
    %v569 = vmax.f32 %v447, 0.0
    %v570 = vmax.f32 %v449, 0.0
    %v571 = vmax.f32 %v451, 0.0
    %v572 = vmax.f32 %v453, 0.0
    %v573 = vmax.f32 %v457, 0.0
    %v574 = vmax.f32 %v459, 0.0
    %v575 = vmax.f32 %v461, 0.0
    %v576 = vmax.f32 %v463, 0.0
    %v577 = vmax.f32 %v467, 0.0
    %v578 = vmax.f32 %v469, 0.0
    %v579 = vmax.f32 %v471, 0.0
    %v580 = vmax.f32 %v473, 0.0
    %v581 = vmax.f32 %v477, 0.0
    %v582 = vmax.f32 %v479, 0.0
    %v583 = vmax.f32 %v481, 0.0
    %v584 = vmax.f32 %v483, 0.0
    %v585 = vmax.f32 %v487, 0.0
    %v586 = vmax.f32 %v489, 0.0
    %v587 = vmax.f32 %v491, 0.0
    %v588 = vmax.f32 %v493, 0.0
    %v589 = vmax.f32 %v497, 0.0
    %v590 = vmax.f32 %v499, 0.0
    %v591 = vmax.f32 %v501, 0.0
    %v592 = vmax.f32 %v503, 0.0
    %v593 = vmax.f32 %v507, 0.0
    %v594 = vmax.f32 %v509, 0.0
    %v595 = vmax.f32 %v511, 0.0
    %v596 = vmax.f32 %v513, 0.0
    %v597 = vmax.f32 %v517, 0.0
    %v598 = vmax.f32 %v519, 0.0
    %v599 = vmax.f32 %v521, 0.0
    %v600 = vmax.f32 %v523, 0.0
    %v601 = vmax.f32 %v527, 0.0
    %v602 = vmax.f32 %v529, 0.0
    %v603 = vmax.f32 %v531, 0.0
    %v604 = vmax.f32 %v533, 0.0
    %v605 = vmax.f32 %v537, 0.0
    %v606 = vmax.f32 %v539, 0.0
    %v607 = vmax.f32 %v541, 0.0
    %v608 = vmax.f32 %v543, 0.0
    %v609 = vld [vmem:[#allocation8] sm:$0xf]
    %v610 = vld [vmem:[#allocation8 + $0x4] sm:$0xf]
    %v611 = vld [vmem:[#allocation8 + $0x8] sm:$0xf]
    %v612 = vld [vmem:[#allocation8 + $0xc] sm:$0xf]
    %v613 = vld [vmem:[#allocation8 + $0x10] sm:$0xf]
    %v614 = vld [vmem:[#allocation8 + $0x14] sm:$0xf]
    %v615 = vld [vmem:[#allocation8 + $0x18] sm:$0xf]
    %v616 = vld [vmem:[#allocation8 + $0x1c] sm:$0xf]
    %v617 = vld [vmem:[#allocation8 + $0x20] sm:$0xf]
    %v618 = vld [vmem:[#allocation8 + $0x24] sm:$0xf]
    %v619 = vld [vmem:[#allocation8 + $0x28] sm:$0xf]
    %v620 = vld [vmem:[#allocation8 + $0x2c] sm:$0xf]
    %v621 = vld [vmem:[#allocation8 + $0x30] sm:$0xf]
    %v622 = vld [vmem:[#allocation8 + $0x34] sm:$0xf]
    %v623 = vld [vmem:[#allocation8 + $0x38] sm:$0xf]
    %v624 = vld [vmem:[#allocation8 + $0x3c] sm:$0xf]
    %v625 = vpack.c.bf16 %v547, %v545
    %v626 = vpack.c.bf16 %v548, %v546
    %v627 = vpack.c.bf16 %v551, %v549
    %v628 = vpack.c.bf16 %v552, %v550
    %v629 = vpack.c.bf16 %v555, %v553
    %v630 = vpack.c.bf16 %v556, %v554
    %v631 = vpack.c.bf16 %v559, %v557
    %v632 = vpack.c.bf16 %v560, %v558
    %v633 = vpack.c.bf16 %v563, %v561
    %v634 = vpack.c.bf16 %v564, %v562
    %v635 = vpack.c.bf16 %v567, %v565
    %v636 = vpack.c.bf16 %v568, %v566
    %v637 = vpack.c.bf16 %v571, %v569
    %v638 = vpack.c.bf16 %v572, %v570
    %v639 = vpack.c.bf16 %v575, %v573
    %v640 = vpack.c.bf16 %v576, %v574
    %v641 = vpack.c.bf16 %v579, %v577
    %v642 = vpack.c.bf16 %v580, %v578
    %v643 = vpack.c.bf16 %v583, %v581
    %v644 = vpack.c.bf16 %v584, %v582
    %v645 = vpack.c.bf16 %v587, %v585
    %v646 = vpack.c.bf16 %v588, %v586
    %v647 = vpack.c.bf16 %v591, %v589
    %v648 = vpack.c.bf16 %v592, %v590
    %v649 = vpack.c.bf16 %v595, %v593
    %v650 = vpack.c.bf16 %v596, %v594
    %v651 = vpack.c.bf16 %v599, %v597
    %v652 = vpack.c.bf16 %v600, %v598
    %v653 = vpack.c.bf16 %v603, %v601
    %v654 = vpack.c.bf16 %v604, %v602
    %v655 = vpack.c.bf16 %v607, %v605
    %v656 = vpack.c.bf16 %v608, %v606
    %v657 = vld [vmem:[#allocation10] sm:$0xf]
    %v658 = vld [vmem:[#allocation10 + $0x4] sm:$0xf]
    %v659 = vld [vmem:[#allocation10 + $0x8] sm:$0xf]
    %v660 = vld [vmem:[#allocation10 + $0xc] sm:$0xf]
    %v661 = vld [vmem:[#allocation10 + $0x10] sm:$0xf]
    %v662 = vld [vmem:[#allocation10 + $0x14] sm:$0xf]
    %v663 = vld [vmem:[#allocation10 + $0x18] sm:$0xf]
    %v664 = vld [vmem:[#allocation10 + $0x1c] sm:$0xf]
    %v665 = vld [vmem:[#allocation10 + $0x20] sm:$0xf]
    %v666 = vld [vmem:[#allocation10 + $0x24] sm:$0xf]
    %v667 = vld [vmem:[#allocation10 + $0x28] sm:$0xf]
    %v668 = vld [vmem:[#allocation10 + $0x2c] sm:$0xf]
    %v669 = vld [vmem:[#allocation10 + $0x30] sm:$0xf]
    %v670 = vld [vmem:[#allocation10 + $0x34] sm:$0xf]
    %v671 = vld [vmem:[#allocation10 + $0x38] sm:$0xf]
    %v672 = vld [vmem:[#allocation10 + $0x3c] sm:$0xf]
    %v673 = vld [vmem:[#allocation10 + $0x40] sm:$0xf]
    %v674 = vld [vmem:[#allocation10 + $0x44] sm:$0xf]
    %v675 = vld [vmem:[#allocation10 + $0x48] sm:$0xf]
    %v676 = vld [vmem:[#allocation10 + $0x4c] sm:$0xf]
    %v677 = vld [vmem:[#allocation10 + $0x50] sm:$0xf]
    %v678 = vld [vmem:[#allocation10 + $0x54] sm:$0xf]
    %v679 = vld [vmem:[#allocation10 + $0x58] sm:$0xf]
    %v680 = vld [vmem:[#allocation10 + $0x5c] sm:$0xf]
    %v681 = vld [vmem:[#allocation10 + $0x60] sm:$0xf]
    %v682 = vld [vmem:[#allocation10 + $0x64] sm:$0xf]
    %v683 = vld [vmem:[#allocation10 + $0x68] sm:$0xf]
    %v684 = vld [vmem:[#allocation10 + $0x6c] sm:$0xf]
    %v685 = vld [vmem:[#allocation10 + $0x70] sm:$0xf]
    %v686 = vld [vmem:[#allocation10 + $0x74] sm:$0xf]
    %v687 = vld [vmem:[#allocation10 + $0x78] sm:$0xf]
    %v688 = vld [vmem:[#allocation10 + $0x7c] sm:$0xf]
    %v721 = vunpack.c.l.b16 %v657
    %v722 = vunpack.c.l.b16 %v658
    %v723 = vunpack.c.l.b16 %v659
    %v724 = vunpack.c.l.b16 %v660
    %v725 = vunpack.c.l.b16 %v661
    %v726 = vunpack.c.l.b16 %v662
    %v727 = vunpack.c.l.b16 %v663
    %v728 = vunpack.c.l.b16 %v664
    %v729 = vunpack.c.l.b16 %v665
    %v730 = vunpack.c.l.b16 %v666
    %v731 = vunpack.c.l.b16 %v667
    %v732 = vunpack.c.l.b16 %v668
    %v733 = vunpack.c.l.b16 %v669
    %v734 = vunpack.c.l.b16 %v670
    %v735 = vunpack.c.l.b16 %v671
    %v736 = vunpack.c.l.b16 %v672
    %v737 = vunpack.c.l.b16 %v673
    %v738 = vunpack.c.l.b16 %v674
    %v739 = vunpack.c.l.b16 %v675
    %v740 = vunpack.c.l.b16 %v676
    %v741 = vunpack.c.l.b16 %v677
    %v742 = vunpack.c.l.b16 %v678
    %v743 = vunpack.c.l.b16 %v679
    %v744 = vunpack.c.l.b16 %v680
    %v745 = vunpack.c.l.b16 %v681
    %v746 = vunpack.c.l.b16 %v682
    %v747 = vunpack.c.l.b16 %v683
    %v748 = vunpack.c.l.b16 %v684
    %v749 = vunpack.c.l.b16 %v685
    %v750 = vunpack.c.l.b16 %v686
    %v751 = vunpack.c.l.b16 %v687
    %v752 = vunpack.c.l.b16 %v688
    %v753 = vpack.c.b16 %v722, %v721
    %v754 = vpack.c.b16 %v724, %v723
    %v755 = vpack.c.b16 %v726, %v725
    %v756 = vpack.c.b16 %v728, %v727
    %v757 = vpack.c.b16 %v730, %v729
    %v758 = vpack.c.b16 %v732, %v731
    %v759 = vpack.c.b16 %v734, %v733
    %v760 = vpack.c.b16 %v736, %v735
    %v761 = vpack.c.b16 %v738, %v737
    %v762 = vpack.c.b16 %v740, %v739
    %v763 = vpack.c.b16 %v742, %v741
    %v764 = vpack.c.b16 %v744, %v743
    %v765 = vpack.c.b16 %v746, %v745
    %v766 = vpack.c.b16 %v748, %v747
    %v767 = vpack.c.b16 %v750, %v749
    %v768 = vpack.c.b16 %v752, %v751
    %785 = vmatprep.subr.bf16.mxu0 0
    %786 = vmatpush1.bf16.msra.mxu0 %v753
    %787 = vmatprep.subr.bf16.mxu0 0
    %788 = vmatpush1.bf16.msra.mxu0 %v754
    %789 = vmatprep.subr.bf16.mxu0 0
    %790 = vmatpush1.bf16.msra.mxu0 %v755
    %791 = vmatprep.subr.bf16.mxu0 0
    %792 = vmatpush1.bf16.msra.mxu0 %v756
    %793 = vmatprep.subr.bf16.mxu0 0
    %794 = vmatpush1.bf16.msra.mxu0 %v757
    %795 = vmatprep.subr.bf16.mxu0 0
    %796 = vmatpush1.bf16.msra.mxu0 %v758
    %797 = vmatprep.subr.bf16.mxu0 0
    %798 = vmatpush1.bf16.msra.mxu0 %v759
    %799 = vmatprep.subr.bf16.mxu0 0
    %800 = vmatpush1.bf16.msra.mxu0 %v760
    %801 = vmatprep.subr.bf16.mxu0 0
    %802 = vmatpush1.bf16.msra.mxu0 %v761
    %803 = vmatprep.subr.bf16.mxu0 0
    %804 = vmatpush1.bf16.msra.mxu0 %v762
    %805 = vmatprep.subr.bf16.mxu0 0
    %806 = vmatpush1.bf16.msra.mxu0 %v763
    %807 = vmatprep.subr.bf16.mxu0 0
    %808 = vmatpush1.bf16.msra.mxu0 %v764
    %809 = vmatprep.subr.bf16.mxu0 0
    %810 = vmatpush1.bf16.msra.mxu0 %v765
    %811 = vmatprep.subr.bf16.mxu0 0
    %812 = vmatpush1.bf16.msra.mxu0 %v766
    %813 = vmatprep.subr.bf16.mxu0 0
    %814 = vmatpush1.bf16.msra.mxu0 %v767
    %815 = vmatprep.subr.bf16.mxu0 0
    %816 = vmatpush1.bf16.msra.mxu0 %v768
    %817 = vmatprep.mubr.bf16.mxu0 %v626
    %818 = vmatmul.mubr.bf16.gmra.mrb[0].mxu0 %v625
    %v819 = vpop.f32.mrb[0].mxu0
    %v820 = vadd.f32 0.0, %v819
    %v821 = vpop.f32.mrb[0].mxu0
    %v822 = vpop.f32.mrb[0].mxu0
    %v823 = vadd.f32 0.0, %v822
    %v824 = vpop.f32.mrb[0].mxu0
    %825 = vmatprep.mubr.bf16.mxu0 %v628
    %826 = vmatmul.mubr.bf16.gmra.mrb[0].mxu0 %v627
    %v827 = vpop.f32.mrb[0].mxu0
    %v828 = vadd.f32 0.0, %v827
    %v829 = vpop.f32.mrb[0].mxu0
    %v830 = vpop.f32.mrb[0].mxu0
    %v831 = vadd.f32 0.0, %v830
    %v832 = vpop.f32.mrb[0].mxu0
    %833 = vmatprep.mubr.bf16.mxu0 %v630
    %834 = vmatmul.mubr.bf16.gmra.mrb[0].mxu0 %v629
    %v835 = vpop.f32.mrb[0].mxu0
    %v836 = vadd.f32 0.0, %v835
    %v837 = vpop.f32.mrb[0].mxu0
    %v838 = vpop.f32.mrb[0].mxu0
    %v839 = vadd.f32 0.0, %v838
    %v840 = vpop.f32.mrb[0].mxu0
    %841 = vmatprep.mubr.bf16.mxu0 %v632
    %842 = vmatmul.mubr.bf16.gmra.mrb[0].mxu0 %v631
    %v843 = vpop.f32.mrb[0].mxu0
    %v844 = vadd.f32 0.0, %v843
    %v845 = vpop.f32.mrb[0].mxu0
    %v846 = vpop.f32.mrb[0].mxu0
    %v847 = vadd.f32 0.0, %v846
    %v848 = vpop.f32.mrb[0].mxu0
    %849 = vmatprep.mubr.bf16.mxu0 %v634
    %850 = vmatmul.mubr.bf16.gmra.mrb[0].mxu0 %v633
    %v851 = vpop.f32.mrb[0].mxu0
    %v852 = vadd.f32 0.0, %v851
    %v853 = vpop.f32.mrb[0].mxu0
    %v854 = vpop.f32.mrb[0].mxu0
    %v855 = vadd.f32 0.0, %v854
    %v856 = vpop.f32.mrb[0].mxu0
    %857 = vmatprep.mubr.bf16.mxu0 %v636
    %858 = vmatmul.mubr.bf16.gmra.mrb[0].mxu0 %v635
    %v859 = vpop.f32.mrb[0].mxu0
    %v860 = vadd.f32 0.0, %v859
    %v861 = vpop.f32.mrb[0].mxu0
    %v862 = vpop.f32.mrb[0].mxu0
    %v863 = vadd.f32 0.0, %v862
    %v864 = vpop.f32.mrb[0].mxu0
    %865 = vmatprep.mubr.bf16.mxu0 %v638
    %866 = vmatmul.mubr.bf16.gmra.mrb[0].mxu0 %v637
    %v867 = vpop.f32.mrb[0].mxu0
    %v868 = vadd.f32 0.0, %v867
    %v869 = vpop.f32.mrb[0].mxu0
    %v870 = vpop.f32.mrb[0].mxu0
    %v871 = vadd.f32 0.0, %v870
    %v872 = vpop.f32.mrb[0].mxu0
    %873 = vmatprep.mubr.bf16.mxu0 %v640
    %874 = vmatmul.mubr.bf16.gmra.mrb[0].mxu0 %v639
    %v875 = vpop.f32.mrb[0].mxu0
    %v876 = vadd.f32 0.0, %v875
    %v877 = vpop.f32.mrb[0].mxu0
    %v878 = vpop.f32.mrb[0].mxu0
    %v879 = vadd.f32 0.0, %v878
    %v880 = vpop.f32.mrb[0].mxu0
    %881 = vmatprep.mubr.bf16.mxu0 %v642
    %882 = vmatmul.mubr.bf16.gmra.mrb[0].mxu0 %v641
    %v883 = vpop.f32.mrb[0].mxu0
    %v884 = vadd.f32 0.0, %v883
    %v885 = vpop.f32.mrb[0].mxu0
    %v886 = vpop.f32.mrb[0].mxu0
    %v887 = vadd.f32 0.0, %v886
    %v888 = vpop.f32.mrb[0].mxu0
    %889 = vmatprep.mubr.bf16.mxu0 %v644
    %890 = vmatmul.mubr.bf16.gmra.mrb[0].mxu0 %v643
    %v891 = vpop.f32.mrb[0].mxu0
    %v892 = vadd.f32 0.0, %v891
    %v893 = vpop.f32.mrb[0].mxu0
    %v894 = vpop.f32.mrb[0].mxu0
    %v895 = vadd.f32 0.0, %v894
    %v896 = vpop.f32.mrb[0].mxu0
    %897 = vmatprep.mubr.bf16.mxu0 %v646
    %898 = vmatmul.mubr.bf16.gmra.mrb[0].mxu0 %v645
    %v899 = vpop.f32.mrb[0].mxu0
    %v900 = vadd.f32 0.0, %v899
    %v901 = vpop.f32.mrb[0].mxu0
    %v902 = vpop.f32.mrb[0].mxu0
    %v903 = vadd.f32 0.0, %v902
    %v904 = vpop.f32.mrb[0].mxu0
    %905 = vmatprep.mubr.bf16.mxu0 %v648
    %906 = vmatmul.mubr.bf16.gmra.mrb[0].mxu0 %v647
    %v907 = vpop.f32.mrb[0].mxu0
    %v908 = vadd.f32 0.0, %v907
    %v909 = vpop.f32.mrb[0].mxu0
    %v910 = vpop.f32.mrb[0].mxu0
    %v911 = vadd.f32 0.0, %v910
    %v912 = vpop.f32.mrb[0].mxu0
    %913 = vmatprep.mubr.bf16.mxu0 %v650
    %914 = vmatmul.mubr.bf16.gmra.mrb[0].mxu0 %v649
    %v915 = vpop.f32.mrb[0].mxu0
    %v916 = vadd.f32 0.0, %v915
    %v917 = vpop.f32.mrb[0].mxu0
    %v918 = vpop.f32.mrb[0].mxu0
    %v919 = vadd.f32 0.0, %v918
    %v920 = vpop.f32.mrb[0].mxu0
    %921 = vmatprep.mubr.bf16.mxu0 %v652
    %922 = vmatmul.mubr.bf16.gmra.mrb[0].mxu0 %v651
    %v923 = vpop.f32.mrb[0].mxu0
    %v924 = vadd.f32 0.0, %v923
    %v925 = vpop.f32.mrb[0].mxu0
    %v926 = vpop.f32.mrb[0].mxu0
    %v927 = vadd.f32 0.0, %v926
    %v928 = vpop.f32.mrb[0].mxu0
    %929 = vmatprep.mubr.bf16.mxu0 %v654
    %930 = vmatmul.mubr.bf16.gmra.mrb[0].mxu0 %v653
    %v931 = vpop.f32.mrb[0].mxu0
    %v932 = vadd.f32 0.0, %v931
    %v933 = vpop.f32.mrb[0].mxu0
    %v934 = vpop.f32.mrb[0].mxu0
    %v935 = vadd.f32 0.0, %v934
    %v936 = vpop.f32.mrb[0].mxu0
    %937 = vmatprep.mubr.bf16.mxu0 %v656
    %938 = vmatmul.mubr.bf16.gmra.mrb[0].mxu0 %v655
    %v939 = vpop.f32.mrb[0].mxu0
    %v940 = vadd.f32 0.0, %v939
    %v941 = vpop.f32.mrb[0].mxu0
    %v942 = vpop.f32.mrb[0].mxu0
    %v943 = vadd.f32 0.0, %v942
    %v944 = vpop.f32.mrb[0].mxu0
    %945 = vdwg.mxu0
    %v962 = vunpack.c.l.b16 %v609
    %v963 = vunpack.c.l.b16 %v610
    %v964 = vunpack.c.l.b16 %v611
    %v965 = vunpack.c.l.b16 %v612
    %v966 = vunpack.c.l.b16 %v613
    %v967 = vunpack.c.l.b16 %v614
    %v968 = vunpack.c.l.b16 %v615
    %v969 = vunpack.c.l.b16 %v616
    %v970 = vunpack.c.l.b16 %v617
    %v971 = vunpack.c.l.b16 %v618
    %v972 = vunpack.c.l.b16 %v619
    %v973 = vunpack.c.l.b16 %v620
    %v974 = vunpack.c.l.b16 %v621
    %v975 = vunpack.c.l.b16 %v622
    %v976 = vunpack.c.l.b16 %v623
    %v977 = vunpack.c.l.b16 %v624
    %v978 = vpack.c.b16 %v963, %v962
    %v979 = vpack.c.b16 %v965, %v964
    %v980 = vpack.c.b16 %v967, %v966
    %v981 = vpack.c.b16 %v969, %v968
    %v982 = vpack.c.b16 %v971, %v970
    %v983 = vpack.c.b16 %v973, %v972
    %v984 = vpack.c.b16 %v975, %v974
    %v985 = vpack.c.b16 %v977, %v976
    %994 = vmatprep.subr.bf16.mxu0 0
    %995 = vmatpush1.bf16.msra.mxu0 %v978
    %996 = vmatprep.subr.bf16.mxu0 0
    %997 = vmatpush1.bf16.msra.mxu0 %v979
    %998 = vmatprep.subr.bf16.mxu0 0
    %999 = vmatpush1.bf16.msra.mxu0 %v980
    %1000 = vmatprep.subr.bf16.mxu0 0
    %1001 = vmatpush1.bf16.msra.mxu0 %v981
    %1002 = vmatprep.subr.bf16.mxu0 0
    %1003 = vmatpush1.bf16.msra.mxu0 %v982
    %1004 = vmatprep.subr.bf16.mxu0 0
    %1005 = vmatpush1.bf16.msra.mxu0 %v983
    %1006 = vmatprep.subr.bf16.mxu0 0
    %1007 = vmatpush1.bf16.msra.mxu0 %v984
    %1008 = vmatprep.subr.bf16.mxu0 0
    %1009 = vmatpush1.bf16.msra.mxu0 %v985
    %1010 = vmatprep.subr.bf16.mxu0 0
    %1011 = vmatpush1.bf16.msra.mxu0 0
    %1012 = vmatprep.subr.bf16.mxu0 0
    %1013 = vmatpush1.bf16.msra.mxu0 0
    %1014 = vmatprep.subr.bf16.mxu0 0
    %1015 = vmatpush1.bf16.msra.mxu0 0
    %1016 = vmatprep.subr.bf16.mxu0 0
    %1017 = vmatpush1.bf16.msra.mxu0 0
    %1018 = vmatprep.subr.bf16.mxu0 0
    %1019 = vmatpush1.bf16.msra.mxu0 0
    %1020 = vmatprep.subr.bf16.mxu0 0
    %1021 = vmatpush1.bf16.msra.mxu0 0
    %1022 = vmatprep.subr.bf16.mxu0 0
    %1023 = vmatpush1.bf16.msra.mxu0 0
    %1024 = vmatprep.subr.bf16.mxu0 0
    %1025 = vmatpush1.bf16.msra.mxu0 0
    %1026 = vmatprep.mubr.bf16.mxu0 0
    %1027 = vmatmul.mubr.bf16.gmra.mrb[0].mxu0 %v240
    %v1028 = vpop.f32.mrb[0].mxu0
    %v1029 = vadd.f32 %v820, %v1028
    %v1030 = vpop.f32.mrb[0].mxu0
    %v1031 = vpop.f32.mrb[0].mxu0
    %v1032 = vadd.f32 %v823, %v1031
    %v1033 = vpop.f32.mrb[0].mxu0
    %1034 = vmatprep.mubr.bf16.mxu0 0
    %1035 = vmatmul.mubr.bf16.gmra.mrb[0].mxu0 %v241
    %v1036 = vpop.f32.mrb[0].mxu0
    %v1037 = vadd.f32 %v828, %v1036
    %v1038 = vpop.f32.mrb[0].mxu0
    %v1039 = vpop.f32.mrb[0].mxu0
    %v1040 = vadd.f32 %v831, %v1039
    %v1041 = vpop.f32.mrb[0].mxu0
    %1042 = vmatprep.mubr.bf16.mxu0 0
    %1043 = vmatmul.mubr.bf16.gmra.mrb[0].mxu0 %v242
    %v1044 = vpop.f32.mrb[0].mxu0
    %v1045 = vadd.f32 %v836, %v1044
    %v1046 = vpop.f32.mrb[0].mxu0
    %v1047 = vpop.f32.mrb[0].mxu0
    %v1048 = vadd.f32 %v839, %v1047
    %v1049 = vpop.f32.mrb[0].mxu0
    %1050 = vmatprep.mubr.bf16.mxu0 0
    %1051 = vmatmul.mubr.bf16.gmra.mrb[0].mxu0 %v243
    %v1052 = vpop.f32.mrb[0].mxu0
    %v1053 = vadd.f32 %v844, %v1052
    %v1054 = vpop.f32.mrb[0].mxu0
    %v1055 = vpop.f32.mrb[0].mxu0
    %v1056 = vadd.f32 %v847, %v1055
    %v1057 = vpop.f32.mrb[0].mxu0
    %1058 = vmatprep.mubr.bf16.mxu0 0
    %1059 = vmatmul.mubr.bf16.gmra.mrb[0].mxu0 %v244
    %v1060 = vpop.f32.mrb[0].mxu0
    %v1061 = vadd.f32 %v852, %v1060
    %v1062 = vpop.f32.mrb[0].mxu0
    %v1063 = vpop.f32.mrb[0].mxu0
    %v1064 = vadd.f32 %v855, %v1063
    %v1065 = vpop.f32.mrb[0].mxu0
    %1066 = vmatprep.mubr.bf16.mxu0 0
    %1067 = vmatmul.mubr.bf16.gmra.mrb[0].mxu0 %v245
    %v1068 = vpop.f32.mrb[0].mxu0
    %v1069 = vadd.f32 %v860, %v1068
    %v1070 = vpop.f32.mrb[0].mxu0
    %v1071 = vpop.f32.mrb[0].mxu0
    %v1072 = vadd.f32 %v863, %v1071
    %v1073 = vpop.f32.mrb[0].mxu0
    %1074 = vmatprep.mubr.bf16.mxu0 0
    %1075 = vmatmul.mubr.bf16.gmra.mrb[0].mxu0 %v246
    %v1076 = vpop.f32.mrb[0].mxu0
    %v1077 = vadd.f32 %v868, %v1076
    %v1078 = vpop.f32.mrb[0].mxu0
    %v1079 = vpop.f32.mrb[0].mxu0
    %v1080 = vadd.f32 %v871, %v1079
    %v1081 = vpop.f32.mrb[0].mxu0
    %1082 = vmatprep.mubr.bf16.mxu0 0
    %1083 = vmatmul.mubr.bf16.gmra.mrb[0].mxu0 %v247
    %v1084 = vpop.f32.mrb[0].mxu0
    %v1085 = vadd.f32 %v876, %v1084
    %v1086 = vpop.f32.mrb[0].mxu0
    %v1087 = vpop.f32.mrb[0].mxu0
    %v1088 = vadd.f32 %v879, %v1087
    %v1089 = vpop.f32.mrb[0].mxu0
    %1090 = vmatprep.mubr.bf16.mxu0 0
    %1091 = vmatmul.mubr.bf16.gmra.mrb[0].mxu0 %v248
    %v1092 = vpop.f32.mrb[0].mxu0
    %v1093 = vadd.f32 %v884, %v1092
    %v1094 = vpop.f32.mrb[0].mxu0
    %v1095 = vpop.f32.mrb[0].mxu0
    %v1096 = vadd.f32 %v887, %v1095
    %v1097 = vpop.f32.mrb[0].mxu0
    %1098 = vmatprep.mubr.bf16.mxu0 0
    %1099 = vmatmul.mubr.bf16.gmra.mrb[0].mxu0 %v249
    %v1100 = vpop.f32.mrb[0].mxu0
    %v1101 = vadd.f32 %v892, %v1100
    %v1102 = vpop.f32.mrb[0].mxu0
    %v1103 = vpop.f32.mrb[0].mxu0
    %v1104 = vadd.f32 %v895, %v1103
    %v1105 = vpop.f32.mrb[0].mxu0
    %1106 = vmatprep.mubr.bf16.mxu0 0
    %1107 = vmatmul.mubr.bf16.gmra.mrb[0].mxu0 %v250
    %v1108 = vpop.f32.mrb[0].mxu0
    %v1109 = vadd.f32 %v900, %v1108
    %v1110 = vpop.f32.mrb[0].mxu0
    %v1111 = vpop.f32.mrb[0].mxu0
    %v1112 = vadd.f32 %v903, %v1111
    %v1113 = vpop.f32.mrb[0].mxu0
    %1114 = vmatprep.mubr.bf16.mxu0 0
    %1115 = vmatmul.mubr.bf16.gmra.mrb[0].mxu0 %v251
    %v1116 = vpop.f32.mrb[0].mxu0
    %v1117 = vadd.f32 %v908, %v1116
    %v1118 = vpop.f32.mrb[0].mxu0
    %v1119 = vpop.f32.mrb[0].mxu0
    %v1120 = vadd.f32 %v911, %v1119
    %v1121 = vpop.f32.mrb[0].mxu0
    %1122 = vmatprep.mubr.bf16.mxu0 0
    %1123 = vmatmul.mubr.bf16.gmra.mrb[0].mxu0 %v252
    %v1124 = vpop.f32.mrb[0].mxu0
    %v1125 = vadd.f32 %v916, %v1124
    %v1126 = vpop.f32.mrb[0].mxu0
    %v1127 = vpop.f32.mrb[0].mxu0
    %v1128 = vadd.f32 %v919, %v1127
    %v1129 = vpop.f32.mrb[0].mxu0
    %1130 = vmatprep.mubr.bf16.mxu0 0
    %1131 = vmatmul.mubr.bf16.gmra.mrb[0].mxu0 %v253
    %v1132 = vpop.f32.mrb[0].mxu0
    %v1133 = vadd.f32 %v924, %v1132
    %v1134 = vpop.f32.mrb[0].mxu0
    %v1135 = vpop.f32.mrb[0].mxu0
    %v1136 = vadd.f32 %v927, %v1135
    %v1137 = vpop.f32.mrb[0].mxu0
    %1138 = vmatprep.mubr.bf16.mxu0 0
    %1139 = vmatmul.mubr.bf16.gmra.mrb[0].mxu0 %v254
    %v1140 = vpop.f32.mrb[0].mxu0
    %v1141 = vadd.f32 %v932, %v1140
    %v1142 = vpop.f32.mrb[0].mxu0
    %v1143 = vpop.f32.mrb[0].mxu0
    %v1144 = vadd.f32 %v935, %v1143
    %v1145 = vpop.f32.mrb[0].mxu0
    %1146 = vmatprep.mubr.bf16.mxu0 0
    %1147 = vmatmul.mubr.bf16.gmra.mrb[0].mxu0 %v255
    %v1148 = vpop.f32.mrb[0].mxu0
    %v1149 = vadd.f32 %v940, %v1148
    %v1150 = vpop.f32.mrb[0].mxu0
    %v1151 = vpop.f32.mrb[0].mxu0
    %v1152 = vadd.f32 %v943, %v1151
    %v1153 = vpop.f32.mrb[0].mxu0
    %1154 = vdwg.mxu0
    %v1155 = vld [vmem:[%s6] sm:$0x1]
    %v1157 = vlaneseq
    %v1158 = vshrl.u32 %v1157, 7
    %v1159 = vsub.s32 0, %v1158
    %v1160 = vrot.slane %v1155, %v1159
    %v1162 = vadd.f32 %v1029, %v1160
    %v1163 = vadd.f32 %v1032, %v1160
    %v1164 = vadd.f32 %v1037, %v1160
    %v1165 = vadd.f32 %v1040, %v1160
    %v1166 = vadd.f32 %v1045, %v1160
    %v1167 = vadd.f32 %v1048, %v1160
    %v1168 = vadd.f32 %v1053, %v1160
    %v1169 = vadd.f32 %v1056, %v1160
    %v1170 = vadd.f32 %v1061, %v1160
    %v1171 = vadd.f32 %v1064, %v1160
    %v1172 = vadd.f32 %v1069, %v1160
    %v1173 = vadd.f32 %v1072, %v1160
    %v1174 = vadd.f32 %v1077, %v1160
    %v1175 = vadd.f32 %v1080, %v1160
    %v1176 = vadd.f32 %v1085, %v1160
    %v1177 = vadd.f32 %v1088, %v1160
    %v1178 = vadd.f32 %v1093, %v1160
    %v1179 = vadd.f32 %v1096, %v1160
    %v1180 = vadd.f32 %v1101, %v1160
    %v1181 = vadd.f32 %v1104, %v1160
    %v1182 = vadd.f32 %v1109, %v1160
    %v1183 = vadd.f32 %v1112, %v1160
    %v1184 = vadd.f32 %v1117, %v1160
    %v1185 = vadd.f32 %v1120, %v1160
    %v1186 = vadd.f32 %v1125, %v1160
    %v1187 = vadd.f32 %v1128, %v1160
    %v1188 = vadd.f32 %v1133, %v1160
    %v1189 = vadd.f32 %v1136, %v1160
    %v1190 = vadd.f32 %v1141, %v1160
    %v1191 = vadd.f32 %v1144, %v1160
    %v1192 = vadd.f32 %v1149, %v1160
    %v1193 = vadd.f32 %v1152, %v1160
    %v1194 = vpack.c.bf16 %v1163, %v1162
    %v1195 = vpack.c.bf16 %v1165, %v1164
    %v1196 = vpack.c.bf16 %v1167, %v1166
    %v1197 = vpack.c.bf16 %v1169, %v1168
    %v1198 = vpack.c.bf16 %v1171, %v1170
    %v1199 = vpack.c.bf16 %v1173, %v1172
    %v1200 = vpack.c.bf16 %v1175, %v1174
    %v1201 = vpack.c.bf16 %v1177, %v1176
    %v1202 = vpack.c.bf16 %v1179, %v1178
    %v1203 = vpack.c.bf16 %v1181, %v1180
    %v1204 = vpack.c.bf16 %v1183, %v1182
    %v1205 = vpack.c.bf16 %v1185, %v1184
    %v1206 = vpack.c.bf16 %v1187, %v1186
    %v1207 = vpack.c.bf16 %v1189, %v1188
    %v1208 = vpack.c.bf16 %v1191, %v1190
    %v1209 = vpack.c.bf16 %v1193, %v1192
    %v1226 = vunpack.c.l.b16 %v1194
    %v1227 = vunpack.c.h.b16 %v1194
    %v1228 = vunpack.c.l.b16 %v1195
    %v1229 = vunpack.c.h.b16 %v1195
    %v1230 = vunpack.c.l.b16 %v1196
    %v1231 = vunpack.c.h.b16 %v1196
    %v1232 = vunpack.c.l.b16 %v1197
    %v1233 = vunpack.c.h.b16 %v1197
    %v1234 = vunpack.c.l.b16 %v1198
    %v1235 = vunpack.c.h.b16 %v1198
    %v1236 = vunpack.c.l.b16 %v1199
    %v1237 = vunpack.c.h.b16 %v1199
    %v1238 = vunpack.c.l.b16 %v1200
    %v1239 = vunpack.c.h.b16 %v1200
    %v1240 = vunpack.c.l.b16 %v1201
    %v1241 = vunpack.c.h.b16 %v1201
    %v1242 = vunpack.c.l.b16 %v1202
    %v1243 = vunpack.c.h.b16 %v1202
    %v1244 = vunpack.c.l.b16 %v1203
    %v1245 = vunpack.c.h.b16 %v1203
    %v1246 = vunpack.c.l.b16 %v1204
    %v1247 = vunpack.c.h.b16 %v1204
    %v1248 = vunpack.c.l.b16 %v1205
    %v1249 = vunpack.c.h.b16 %v1205
    %v1250 = vunpack.c.l.b16 %v1206
    %v1251 = vunpack.c.h.b16 %v1206
    %v1252 = vunpack.c.l.b16 %v1207
    %v1253 = vunpack.c.h.b16 %v1207
    %v1254 = vunpack.c.l.b16 %v1208
    %v1255 = vunpack.c.h.b16 %v1208
    %v1256 = vunpack.c.l.b16 %v1209
    %v1257 = vunpack.c.h.b16 %v1209
    %v1258 = vpack.c.b16 %v1226, %v1226
    %v1259 = vpack.c.b16 %v1227, %v1227
    %v1260 = vpack.c.b16 %v1228, %v1228
    %v1261 = vpack.c.b16 %v1229, %v1229
    %v1262 = vpack.c.b16 %v1230, %v1230
    %v1263 = vpack.c.b16 %v1231, %v1231
    %v1264 = vpack.c.b16 %v1232, %v1232
    %v1265 = vpack.c.b16 %v1233, %v1233
    %v1266 = vpack.c.b16 %v1234, %v1234
    %v1267 = vpack.c.b16 %v1235, %v1235
    %v1268 = vpack.c.b16 %v1236, %v1236
    %v1269 = vpack.c.b16 %v1237, %v1237
    %v1270 = vpack.c.b16 %v1238, %v1238
    %v1271 = vpack.c.b16 %v1239, %v1239
    %v1272 = vpack.c.b16 %v1240, %v1240
    %v1273 = vpack.c.b16 %v1241, %v1241
    %v1274 = vpack.c.b16 %v1242, %v1242
    %v1275 = vpack.c.b16 %v1243, %v1243
    %v1276 = vpack.c.b16 %v1244, %v1244
    %v1277 = vpack.c.b16 %v1245, %v1245
    %v1278 = vpack.c.b16 %v1246, %v1246
    %v1279 = vpack.c.b16 %v1247, %v1247
    %v1280 = vpack.c.b16 %v1248, %v1248
    %v1281 = vpack.c.b16 %v1249, %v1249
    %v1282 = vpack.c.b16 %v1250, %v1250
    %v1283 = vpack.c.b16 %v1251, %v1251
    %v1284 = vpack.c.b16 %v1252, %v1252
    %v1285 = vpack.c.b16 %v1253, %v1253
    %v1286 = vpack.c.b16 %v1254, %v1254
    %v1287 = vpack.c.b16 %v1255, %v1255
    %v1288 = vpack.c.b16 %v1256, %v1256
    %v1289 = vpack.c.b16 %v1257, %v1257
    %1322 = vst [vmem:[#allocation13] sm:$0xf] %v1258
    %1323 = vst [vmem:[#allocation13 + $0x4] sm:$0xf] %v1259
    %1324 = vst [vmem:[#allocation13 + $0x8] sm:$0xf] %v1260
    %1325 = vst [vmem:[#allocation13 + $0xc] sm:$0xf] %v1261
    %1326 = vst [vmem:[#allocation13 + $0x10] sm:$0xf] %v1262
    %1327 = vst [vmem:[#allocation13 + $0x14] sm:$0xf] %v1263
    %1328 = vst [vmem:[#allocation13 + $0x18] sm:$0xf] %v1264
    %1329 = vst [vmem:[#allocation13 + $0x1c] sm:$0xf] %v1265
    %1330 = vst [vmem:[#allocation13 + $0x20] sm:$0xf] %v1266
    %1331 = vst [vmem:[#allocation13 + $0x24] sm:$0xf] %v1267
    %1332 = vst [vmem:[#allocation13 + $0x28] sm:$0xf] %v1268
    %1333 = vst [vmem:[#allocation13 + $0x2c] sm:$0xf] %v1269
    %1334 = vst [vmem:[#allocation13 + $0x30] sm:$0xf] %v1270
    %1335 = vst [vmem:[#allocation13 + $0x34] sm:$0xf] %v1271
    %1336 = vst [vmem:[#allocation13 + $0x38] sm:$0xf] %v1272
    %1337 = vst [vmem:[#allocation13 + $0x3c] sm:$0xf] %v1273
    %1338 = vst [vmem:[#allocation13 + $0x40] sm:$0xf] %v1274
    %1339 = vst [vmem:[#allocation13 + $0x44] sm:$0xf] %v1275
    %1340 = vst [vmem:[#allocation13 + $0x48] sm:$0xf] %v1276
    %1341 = vst [vmem:[#allocation13 + $0x4c] sm:$0xf] %v1277
    %1342 = vst [vmem:[#allocation13 + $0x50] sm:$0xf] %v1278
    %1343 = vst [vmem:[#allocation13 + $0x54] sm:$0xf] %v1279
    %1344 = vst [vmem:[#allocation13 + $0x58] sm:$0xf] %v1280
    %1345 = vst [vmem:[#allocation13 + $0x5c] sm:$0xf] %v1281
    %1346 = vst [vmem:[#allocation13 + $0x60] sm:$0xf] %v1282
    %1347 = vst [vmem:[#allocation13 + $0x64] sm:$0xf] %v1283
    %1348 = vst [vmem:[#allocation13 + $0x68] sm:$0xf] %v1284
    %1349 = vst [vmem:[#allocation13 + $0x6c] sm:$0xf] %v1285
    %1350 = vst [vmem:[#allocation13 + $0x70] sm:$0xf] %v1286
    %1351 = vst [vmem:[#allocation13 + $0x74] sm:$0xf] %v1287
    %1352 = vst [vmem:[#allocation13 + $0x78] sm:$0xf] %v1288
    %1353 = vst [vmem:[#allocation13 + $0x7c] sm:$0xf] %v1289
    %v1354 = vld [vmem:[#allocation5] sm:$0xf]
    %v1355 = vld [vmem:[#allocation5 + $0x4] sm:$0xf]
    %v1356 = vld [vmem:[#allocation5 + $0x8] sm:$0xf]
    %v1357 = vld [vmem:[#allocation5 + $0xc] sm:$0xf]
    %v1358 = vld [vmem:[#allocation5 + $0x10] sm:$0xf]
    %v1359 = vld [vmem:[#allocation5 + $0x14] sm:$0xf]
    %v1360 = vld [vmem:[#allocation5 + $0x18] sm:$0xf]
    %v1361 = vld [vmem:[#allocation5 + $0x1c] sm:$0xf]
    %v1362 = vld [vmem:[#allocation5 + $0x20] sm:$0xf]
    %v1363 = vld [vmem:[#allocation5 + $0x24] sm:$0xf]
    %v1364 = vld [vmem:[#allocation5 + $0x28] sm:$0xf]
    %v1365 = vld [vmem:[#allocation5 + $0x2c] sm:$0xf]
    %v1366 = vld [vmem:[#allocation5 + $0x30] sm:$0xf]
    %v1367 = vld [vmem:[#allocation5 + $0x34] sm:$0xf]
    %v1368 = vld [vmem:[#allocation5 + $0x38] sm:$0xf]
    %v1369 = vld [vmem:[#allocation5 + $0x3c] sm:$0xf]
    %v1370 = vld [vmem:[#allocation5 + $0x40] sm:$0xf]
    %v1371 = vld [vmem:[#allocation5 + $0x44] sm:$0xf]
    %v1372 = vld [vmem:[#allocation5 + $0x48] sm:$0xf]
    %v1373 = vld [vmem:[#allocation5 + $0x4c] sm:$0xf]
    %v1374 = vld [vmem:[#allocation5 + $0x50] sm:$0xf]
    %v1375 = vld [vmem:[#allocation5 + $0x54] sm:$0xf]
    %v1376 = vld [vmem:[#allocation5 + $0x58] sm:$0xf]
    %v1377 = vld [vmem:[#allocation5 + $0x5c] sm:$0xf]
    %v1378 = vld [vmem:[#allocation5 + $0x60] sm:$0xf]
    %v1379 = vld [vmem:[#allocation5 + $0x64] sm:$0xf]
    %v1380 = vld [vmem:[#allocation5 + $0x68] sm:$0xf]
    %v1381 = vld [vmem:[#allocation5 + $0x6c] sm:$0xf]
    %v1382 = vld [vmem:[#allocation5 + $0x70] sm:$0xf]
    %v1383 = vld [vmem:[#allocation5 + $0x74] sm:$0xf]
    %v1384 = vld [vmem:[#allocation5 + $0x78] sm:$0xf]
    %v1385 = vld [vmem:[#allocation5 + $0x7c] sm:$0xf]
    %v1386 = vld [vmem:[#allocation11] sm:$0xff]
    %v1387 = vld [vmem:[#allocation11 + $0x8] sm:$0xff]
    %v1388 = vld [vmem:[#allocation11 + $0x10] sm:$0xff]
    %v1389 = vld [vmem:[#allocation11 + $0x18] sm:$0xff]
    %v1390 = vld [vmem:[#allocation11 + $0x20] sm:$0xff]
    %v1391 = vld [vmem:[#allocation11 + $0x28] sm:$0xff]
    %v1392 = vld [vmem:[#allocation11 + $0x30] sm:$0xff]
    %v1393 = vld [vmem:[#allocation11 + $0x38] sm:$0xff]
    %v1394 = vld [vmem:[#allocation11 + $0x40] sm:$0xff]
    %v1395 = vld [vmem:[#allocation11 + $0x48] sm:$0xff]
    %v1396 = vld [vmem:[#allocation11 + $0x50] sm:$0xff]
    %v1397 = vld [vmem:[#allocation11 + $0x58] sm:$0xff]
    %v1398 = vld [vmem:[#allocation11 + $0x60] sm:$0xff]
    %v1399 = vld [vmem:[#allocation11 + $0x68] sm:$0xff]
    %v1400 = vld [vmem:[#allocation11 + $0x70] sm:$0xff]
    %v1401 = vld [vmem:[#allocation11 + $0x78] sm:$0xff]
    %v1434 = vunpack.c.l.b16 %v1354
    %v1435 = vunpack.c.l.b16 %v1355
    %v1436 = vunpack.c.l.b16 %v1356
    %v1437 = vunpack.c.l.b16 %v1357
    %v1438 = vunpack.c.l.b16 %v1358
    %v1439 = vunpack.c.l.b16 %v1359
    %v1440 = vunpack.c.l.b16 %v1360
    %v1441 = vunpack.c.l.b16 %v1361
    %v1442 = vunpack.c.l.b16 %v1362
    %v1443 = vunpack.c.l.b16 %v1363
    %v1444 = vunpack.c.l.b16 %v1364
    %v1445 = vunpack.c.l.b16 %v1365
    %v1446 = vunpack.c.l.b16 %v1366
    %v1447 = vunpack.c.l.b16 %v1367
    %v1448 = vunpack.c.l.b16 %v1368
    %v1449 = vunpack.c.l.b16 %v1369
    %v1450 = vunpack.c.l.b16 %v1370
    %v1451 = vunpack.c.l.b16 %v1371
    %v1452 = vunpack.c.l.b16 %v1372
    %v1453 = vunpack.c.l.b16 %v1373
    %v1454 = vunpack.c.l.b16 %v1374
    %v1455 = vunpack.c.l.b16 %v1375
    %v1456 = vunpack.c.l.b16 %v1376
    %v1457 = vunpack.c.l.b16 %v1377
    %v1458 = vunpack.c.l.b16 %v1378
    %v1459 = vunpack.c.l.b16 %v1379
    %v1460 = vunpack.c.l.b16 %v1380
    %v1461 = vunpack.c.l.b16 %v1381
    %v1462 = vunpack.c.l.b16 %v1382
    %v1463 = vunpack.c.l.b16 %v1383
    %v1464 = vunpack.c.l.b16 %v1384
    %v1465 = vunpack.c.l.b16 %v1385
    %v1466 = vpack.c.b16 %v1435, %v1434
    %v1467 = vpack.c.b16 %v1437, %v1436
    %v1468 = vpack.c.b16 %v1439, %v1438
    %v1469 = vpack.c.b16 %v1441, %v1440
    %v1470 = vpack.c.b16 %v1443, %v1442
    %v1471 = vpack.c.b16 %v1445, %v1444
    %v1472 = vpack.c.b16 %v1447, %v1446
    %v1473 = vpack.c.b16 %v1449, %v1448
    %v1474 = vpack.c.b16 %v1451, %v1450
    %v1475 = vpack.c.b16 %v1453, %v1452
    %v1476 = vpack.c.b16 %v1455, %v1454
    %v1477 = vpack.c.b16 %v1457, %v1456
    %v1478 = vpack.c.b16 %v1459, %v1458
    %v1479 = vpack.c.b16 %v1461, %v1460
    %v1480 = vpack.c.b16 %v1463, %v1462
    %v1481 = vpack.c.b16 %v1465, %v1464
    %v1514 = vunpack.c.l.b16 %v1386
    %v1515 = vunpack.c.h.b16 %v1386
    %v1516 = vunpack.c.l.b16 %v1387
    %v1517 = vunpack.c.h.b16 %v1387
    %v1518 = vunpack.c.l.b16 %v1388
    %v1519 = vunpack.c.h.b16 %v1388
    %v1520 = vunpack.c.l.b16 %v1389
    %v1521 = vunpack.c.h.b16 %v1389
    %v1522 = vunpack.c.l.b16 %v1390
    %v1523 = vunpack.c.h.b16 %v1390
    %v1524 = vunpack.c.l.b16 %v1391
    %v1525 = vunpack.c.h.b16 %v1391
    %v1526 = vunpack.c.l.b16 %v1392
    %v1527 = vunpack.c.h.b16 %v1392
    %v1528 = vunpack.c.l.b16 %v1393
    %v1529 = vunpack.c.h.b16 %v1393
    %v1530 = vunpack.c.l.b16 %v1394
    %v1531 = vunpack.c.h.b16 %v1394
    %v1532 = vunpack.c.l.b16 %v1395
    %v1533 = vunpack.c.h.b16 %v1395
    %v1534 = vunpack.c.l.b16 %v1396
    %v1535 = vunpack.c.h.b16 %v1396
    %v1536 = vunpack.c.l.b16 %v1397
    %v1537 = vunpack.c.h.b16 %v1397
    %v1538 = vunpack.c.l.b16 %v1398
    %v1539 = vunpack.c.h.b16 %v1398
    %v1540 = vunpack.c.l.b16 %v1399
    %v1541 = vunpack.c.h.b16 %v1399
    %v1542 = vunpack.c.l.b16 %v1400
    %v1543 = vunpack.c.h.b16 %v1400
    %v1544 = vunpack.c.l.b16 %v1401
    %v1545 = vunpack.c.h.b16 %v1401
    %v1546 = vpack.c.b16 %v1516, %v1514
    %v1547 = vpack.c.b16 %v1517, %v1515
    %v1548 = vpack.c.b16 %v1520, %v1518
    %v1549 = vpack.c.b16 %v1521, %v1519
    %v1550 = vpack.c.b16 %v1524, %v1522
    %v1551 = vpack.c.b16 %v1525, %v1523
    %v1552 = vpack.c.b16 %v1528, %v1526
    %v1553 = vpack.c.b16 %v1529, %v1527
    %v1554 = vpack.c.b16 %v1532, %v1530
    %v1555 = vpack.c.b16 %v1533, %v1531
    %v1556 = vpack.c.b16 %v1536, %v1534
    %v1557 = vpack.c.b16 %v1537, %v1535
    %v1558 = vpack.c.b16 %v1540, %v1538
    %v1559 = vpack.c.b16 %v1541, %v1539
    %v1560 = vpack.c.b16 %v1544, %v1542
    %v1561 = vpack.c.b16 %v1545, %v1543
    %1578 = vmatprep.subr.bf16.mxu0 %v1547
    %1579 = vmatpush1.bf16.msra.mxu0 %v1546
    %1580 = vmatprep.subr.bf16.mxu0 %v1549
    %1581 = vmatpush1.bf16.msra.mxu0 %v1548
    %1582 = vmatprep.subr.bf16.mxu0 %v1551
    %1583 = vmatpush1.bf16.msra.mxu0 %v1550
    %1584 = vmatprep.subr.bf16.mxu0 %v1553
    %1585 = vmatpush1.bf16.msra.mxu0 %v1552
    %1586 = vmatprep.subr.bf16.mxu0 %v1555
    %1587 = vmatpush1.bf16.msra.mxu0 %v1554
    %1588 = vmatprep.subr.bf16.mxu0 %v1557
    %1589 = vmatpush1.bf16.msra.mxu0 %v1556
    %1590 = vmatprep.subr.bf16.mxu0 %v1559
    %1591 = vmatpush1.bf16.msra.mxu0 %v1558
    %1592 = vmatprep.subr.bf16.mxu0 %v1561
    %1593 = vmatpush1.bf16.msra.mxu0 %v1560
    %1594 = vmatprep.subr.bf16.mxu0 0
    %1595 = vmatpush1.bf16.msra.mxu0 0
    %1596 = vmatprep.subr.bf16.mxu0 0
    %1597 = vmatpush1.bf16.msra.mxu0 0
    %1598 = vmatprep.subr.bf16.mxu0 0
    %1599 = vmatpush1.bf16.msra.mxu0 0
    %1600 = vmatprep.subr.bf16.mxu0 0
    %1601 = vmatpush1.bf16.msra.mxu0 0
    %1602 = vmatprep.subr.bf16.mxu0 0
    %1603 = vmatpush1.bf16.msra.mxu0 0
    %1604 = vmatprep.subr.bf16.mxu0 0
    %1605 = vmatpush1.bf16.msra.mxu0 0
    %1606 = vmatprep.subr.bf16.mxu0 0
    %1607 = vmatpush1.bf16.msra.mxu0 0
    %1608 = vmatprep.subr.bf16.mxu0 0
    %1609 = vmatpush1.bf16.msra.mxu0 0
    %1610 = vmatprep.mubr.bf16.mxu0 0
    %1611 = vmatmul.mubr.bf16.gmra.mrb[0].mxu0 %v1466
    %v1612 = vpop.f32.mrb[0].mxu0
    %v1613 = vadd.f32 0.0, %v1612
    %v1614 = vpop.f32.mrb[0].mxu0
    %v1615 = vadd.f32 0.0, %v1614
    %v1616 = vpop.f32.mrb[0].mxu0
    %v1617 = vadd.f32 0.0, %v1616
    %v1618 = vpop.f32.mrb[0].mxu0
    %v1619 = vadd.f32 0.0, %v1618
    %1620 = vmatprep.mubr.bf16.mxu0 0
    %1621 = vmatmul.mubr.bf16.gmra.mrb[0].mxu0 %v1467
    %v1622 = vpop.f32.mrb[0].mxu0
    %v1623 = vadd.f32 0.0, %v1622
    %v1624 = vpop.f32.mrb[0].mxu0
    %v1625 = vadd.f32 0.0, %v1624
    %v1626 = vpop.f32.mrb[0].mxu0
    %v1627 = vadd.f32 0.0, %v1626
    %v1628 = vpop.f32.mrb[0].mxu0
    %v1629 = vadd.f32 0.0, %v1628
    %1630 = vmatprep.mubr.bf16.mxu0 0
    %1631 = vmatmul.mubr.bf16.gmra.mrb[0].mxu0 %v1468
    %v1632 = vpop.f32.mrb[0].mxu0
    %v1633 = vadd.f32 0.0, %v1632
    %v1634 = vpop.f32.mrb[0].mxu0
    %v1635 = vadd.f32 0.0, %v1634
    %v1636 = vpop.f32.mrb[0].mxu0
    %v1637 = vadd.f32 0.0, %v1636
    %v1638 = vpop.f32.mrb[0].mxu0
    %v1639 = vadd.f32 0.0, %v1638
    %1640 = vmatprep.mubr.bf16.mxu0 0
    %1641 = vmatmul.mubr.bf16.gmra.mrb[0].mxu0 %v1469
    %v1642 = vpop.f32.mrb[0].mxu0
    %v1643 = vadd.f32 0.0, %v1642
    %v1644 = vpop.f32.mrb[0].mxu0
    %v1645 = vadd.f32 0.0, %v1644
    %v1646 = vpop.f32.mrb[0].mxu0
    %v1647 = vadd.f32 0.0, %v1646
    %v1648 = vpop.f32.mrb[0].mxu0
    %v1649 = vadd.f32 0.0, %v1648
    %1650 = vmatprep.mubr.bf16.mxu0 0
    %1651 = vmatmul.mubr.bf16.gmra.mrb[0].mxu0 %v1470
    %v1652 = vpop.f32.mrb[0].mxu0
    %v1653 = vadd.f32 0.0, %v1652
    %v1654 = vpop.f32.mrb[0].mxu0
    %v1655 = vadd.f32 0.0, %v1654
    %v1656 = vpop.f32.mrb[0].mxu0
    %v1657 = vadd.f32 0.0, %v1656
    %v1658 = vpop.f32.mrb[0].mxu0
    %v1659 = vadd.f32 0.0, %v1658
    %1660 = vmatprep.mubr.bf16.mxu0 0
    %1661 = vmatmul.mubr.bf16.gmra.mrb[0].mxu0 %v1471
    %v1662 = vpop.f32.mrb[0].mxu0
    %v1663 = vadd.f32 0.0, %v1662
    %v1664 = vpop.f32.mrb[0].mxu0
    %v1665 = vadd.f32 0.0, %v1664
    %v1666 = vpop.f32.mrb[0].mxu0
    %v1667 = vadd.f32 0.0, %v1666
    %v1668 = vpop.f32.mrb[0].mxu0
    %v1669 = vadd.f32 0.0, %v1668
    %1670 = vmatprep.mubr.bf16.mxu0 0
    %1671 = vmatmul.mubr.bf16.gmra.mrb[0].mxu0 %v1472
    %v1672 = vpop.f32.mrb[0].mxu0
    %v1673 = vadd.f32 0.0, %v1672
    %v1674 = vpop.f32.mrb[0].mxu0
    %v1675 = vadd.f32 0.0, %v1674
    %v1676 = vpop.f32.mrb[0].mxu0
    %v1677 = vadd.f32 0.0, %v1676
    %v1678 = vpop.f32.mrb[0].mxu0
    %v1679 = vadd.f32 0.0, %v1678
    %1680 = vmatprep.mubr.bf16.mxu0 0
    %1681 = vmatmul.mubr.bf16.gmra.mrb[0].mxu0 %v1473
    %v1682 = vpop.f32.mrb[0].mxu0
    %v1683 = vadd.f32 0.0, %v1682
    %v1684 = vpop.f32.mrb[0].mxu0
    %v1685 = vadd.f32 0.0, %v1684
    %v1686 = vpop.f32.mrb[0].mxu0
    %v1687 = vadd.f32 0.0, %v1686
    %v1688 = vpop.f32.mrb[0].mxu0
    %v1689 = vadd.f32 0.0, %v1688
    %1690 = vmatprep.mubr.bf16.mxu0 0
    %1691 = vmatmul.mubr.bf16.gmra.mrb[0].mxu0 %v1474
    %v1692 = vpop.f32.mrb[0].mxu0
    %v1693 = vadd.f32 0.0, %v1692
    %v1694 = vpop.f32.mrb[0].mxu0
    %v1695 = vadd.f32 0.0, %v1694
    %v1696 = vpop.f32.mrb[0].mxu0
    %v1697 = vadd.f32 0.0, %v1696
    %v1698 = vpop.f32.mrb[0].mxu0
    %v1699 = vadd.f32 0.0, %v1698
    %1700 = vmatprep.mubr.bf16.mxu0 0
    %1701 = vmatmul.mubr.bf16.gmra.mrb[0].mxu0 %v1475
    %v1702 = vpop.f32.mrb[0].mxu0
    %v1703 = vadd.f32 0.0, %v1702
    %v1704 = vpop.f32.mrb[0].mxu0
    %v1705 = vadd.f32 0.0, %v1704
    %v1706 = vpop.f32.mrb[0].mxu0
    %v1707 = vadd.f32 0.0, %v1706
    %v1708 = vpop.f32.mrb[0].mxu0
    %v1709 = vadd.f32 0.0, %v1708
    %1710 = vmatprep.mubr.bf16.mxu0 0
    %1711 = vmatmul.mubr.bf16.gmra.mrb[0].mxu0 %v1476
    %v1712 = vpop.f32.mrb[0].mxu0
    %v1713 = vadd.f32 0.0, %v1712
    %v1714 = vpop.f32.mrb[0].mxu0
    %v1715 = vadd.f32 0.0, %v1714
    %v1716 = vpop.f32.mrb[0].mxu0
    %v1717 = vadd.f32 0.0, %v1716
    %v1718 = vpop.f32.mrb[0].mxu0
    %v1719 = vadd.f32 0.0, %v1718
    %1720 = vmatprep.mubr.bf16.mxu0 0
    %1721 = vmatmul.mubr.bf16.gmra.mrb[0].mxu0 %v1477
    %v1722 = vpop.f32.mrb[0].mxu0
    %v1723 = vadd.f32 0.0, %v1722
    %v1724 = vpop.f32.mrb[0].mxu0
    %v1725 = vadd.f32 0.0, %v1724
    %v1726 = vpop.f32.mrb[0].mxu0
    %v1727 = vadd.f32 0.0, %v1726
    %v1728 = vpop.f32.mrb[0].mxu0
    %v1729 = vadd.f32 0.0, %v1728
    %1730 = vmatprep.mubr.bf16.mxu0 0
    %1731 = vmatmul.mubr.bf16.gmra.mrb[0].mxu0 %v1478
    %v1732 = vpop.f32.mrb[0].mxu0
    %v1733 = vadd.f32 0.0, %v1732
    %v1734 = vpop.f32.mrb[0].mxu0
    %v1735 = vadd.f32 0.0, %v1734
    %v1736 = vpop.f32.mrb[0].mxu0
    %v1737 = vadd.f32 0.0, %v1736
    %v1738 = vpop.f32.mrb[0].mxu0
    %v1739 = vadd.f32 0.0, %v1738
    %1740 = vmatprep.mubr.bf16.mxu0 0
    %1741 = vmatmul.mubr.bf16.gmra.mrb[0].mxu0 %v1479
    %v1742 = vpop.f32.mrb[0].mxu0
    %v1743 = vadd.f32 0.0, %v1742
    %v1744 = vpop.f32.mrb[0].mxu0
    %v1745 = vadd.f32 0.0, %v1744
    %v1746 = vpop.f32.mrb[0].mxu0
    %v1747 = vadd.f32 0.0, %v1746
    %v1748 = vpop.f32.mrb[0].mxu0
    %v1749 = vadd.f32 0.0, %v1748
    %1750 = vmatprep.mubr.bf16.mxu0 0
    %1751 = vmatmul.mubr.bf16.gmra.mrb[0].mxu0 %v1480
    %v1752 = vpop.f32.mrb[0].mxu0
    %v1753 = vadd.f32 0.0, %v1752
    %v1754 = vpop.f32.mrb[0].mxu0
    %v1755 = vadd.f32 0.0, %v1754
    %v1756 = vpop.f32.mrb[0].mxu0
    %v1757 = vadd.f32 0.0, %v1756
    %v1758 = vpop.f32.mrb[0].mxu0
    %v1759 = vadd.f32 0.0, %v1758
    %1760 = vmatprep.mubr.bf16.mxu0 0
    %1761 = vmatmul.mubr.bf16.gmra.mrb[0].mxu0 %v1481
    %v1762 = vpop.f32.mrb[0].mxu0
    %v1763 = vadd.f32 0.0, %v1762
    %v1764 = vpop.f32.mrb[0].mxu0
    %v1765 = vadd.f32 0.0, %v1764
    %v1766 = vpop.f32.mrb[0].mxu0
    %v1767 = vadd.f32 0.0, %v1766
    %v1768 = vpop.f32.mrb[0].mxu0
    %v1769 = vadd.f32 0.0, %v1768
    %1770 = vdwg.mxu0
    %v1771 = vpack.c.bf16 %v1617, %v1613
    %v1772 = vpack.c.bf16 %v1619, %v1615
    %v1773 = vpack.c.bf16 %v1627, %v1623
    %v1774 = vpack.c.bf16 %v1629, %v1625
    %v1775 = vpack.c.bf16 %v1637, %v1633
    %v1776 = vpack.c.bf16 %v1639, %v1635
    %v1777 = vpack.c.bf16 %v1647, %v1643
    %v1778 = vpack.c.bf16 %v1649, %v1645
    %v1779 = vpack.c.bf16 %v1657, %v1653
    %v1780 = vpack.c.bf16 %v1659, %v1655
    %v1781 = vpack.c.bf16 %v1667, %v1663
    %v1782 = vpack.c.bf16 %v1669, %v1665
    %v1783 = vpack.c.bf16 %v1677, %v1673
    %v1784 = vpack.c.bf16 %v1679, %v1675
    %v1785 = vpack.c.bf16 %v1687, %v1683
    %v1786 = vpack.c.bf16 %v1689, %v1685
    %v1787 = vpack.c.bf16 %v1697, %v1693
    %v1788 = vpack.c.bf16 %v1699, %v1695
    %v1789 = vpack.c.bf16 %v1707, %v1703
    %v1790 = vpack.c.bf16 %v1709, %v1705
    %v1791 = vpack.c.bf16 %v1717, %v1713
    %v1792 = vpack.c.bf16 %v1719, %v1715
    %v1793 = vpack.c.bf16 %v1727, %v1723
    %v1794 = vpack.c.bf16 %v1729, %v1725
    %v1795 = vpack.c.bf16 %v1737, %v1733
    %v1796 = vpack.c.bf16 %v1739, %v1735
    %v1797 = vpack.c.bf16 %v1747, %v1743
    %v1798 = vpack.c.bf16 %v1749, %v1745
    %v1799 = vpack.c.bf16 %v1757, %v1753
    %v1800 = vpack.c.bf16 %v1759, %v1755
    %v1801 = vpack.c.bf16 %v1767, %v1763
    %v1802 = vpack.c.bf16 %v1769, %v1765
    %v1835 = vunpack.c.l.b16 %v1771
    %v1836 = vunpack.c.l.b16 %v1772
    %v1837 = vunpack.c.h.b16 %v1771
    %v1838 = vunpack.c.h.b16 %v1772
    %v1839 = vunpack.c.l.b16 %v1773
    %v1840 = vunpack.c.l.b16 %v1774
    %v1841 = vunpack.c.h.b16 %v1773
    %v1842 = vunpack.c.h.b16 %v1774
    %v1843 = vunpack.c.l.b16 %v1775
    %v1844 = vunpack.c.l.b16 %v1776
    %v1845 = vunpack.c.h.b16 %v1775
    %v1846 = vunpack.c.h.b16 %v1776
    %v1847 = vunpack.c.l.b16 %v1777
    %v1848 = vunpack.c.l.b16 %v1778
    %v1849 = vunpack.c.h.b16 %v1777
    %v1850 = vunpack.c.h.b16 %v1778
    %v1851 = vunpack.c.l.b16 %v1779
    %v1852 = vunpack.c.l.b16 %v1780
    %v1853 = vunpack.c.h.b16 %v1779
    %v1854 = vunpack.c.h.b16 %v1780
    %v1855 = vunpack.c.l.b16 %v1781
    %v1856 = vunpack.c.l.b16 %v1782
    %v1857 = vunpack.c.h.b16 %v1781
    %v1858 = vunpack.c.h.b16 %v1782
    %v1859 = vunpack.c.l.b16 %v1783
    %v1860 = vunpack.c.l.b16 %v1784
    %v1861 = vunpack.c.h.b16 %v1783
    %v1862 = vunpack.c.h.b16 %v1784
    %v1863 = vunpack.c.l.b16 %v1785
    %v1864 = vunpack.c.l.b16 %v1786
    %v1865 = vunpack.c.h.b16 %v1785
    %v1866 = vunpack.c.h.b16 %v1786
    %v1867 = vunpack.c.l.b16 %v1787
    %v1868 = vunpack.c.l.b16 %v1788
    %v1869 = vunpack.c.h.b16 %v1787
    %v1870 = vunpack.c.h.b16 %v1788
    %v1871 = vunpack.c.l.b16 %v1789
    %v1872 = vunpack.c.l.b16 %v1790
    %v1873 = vunpack.c.h.b16 %v1789
    %v1874 = vunpack.c.h.b16 %v1790
    %v1875 = vunpack.c.l.b16 %v1791
    %v1876 = vunpack.c.l.b16 %v1792
    %v1877 = vunpack.c.h.b16 %v1791
    %v1878 = vunpack.c.h.b16 %v1792
    %v1879 = vunpack.c.l.b16 %v1793
    %v1880 = vunpack.c.l.b16 %v1794
    %v1881 = vunpack.c.h.b16 %v1793
    %v1882 = vunpack.c.h.b16 %v1794
    %v1883 = vunpack.c.l.b16 %v1795
    %v1884 = vunpack.c.l.b16 %v1796
    %v1885 = vunpack.c.h.b16 %v1795
    %v1886 = vunpack.c.h.b16 %v1796
    %v1887 = vunpack.c.l.b16 %v1797
    %v1888 = vunpack.c.l.b16 %v1798
    %v1889 = vunpack.c.h.b16 %v1797
    %v1890 = vunpack.c.h.b16 %v1798
    %v1891 = vunpack.c.l.b16 %v1799
    %v1892 = vunpack.c.l.b16 %v1800
    %v1893 = vunpack.c.h.b16 %v1799
    %v1894 = vunpack.c.h.b16 %v1800
    %v1895 = vunpack.c.l.b16 %v1801
    %v1896 = vunpack.c.l.b16 %v1802
    %v1897 = vunpack.c.h.b16 %v1801
    %v1898 = vunpack.c.h.b16 %v1802
    %v1899 = vpack.c.b16 %v1836, %v1835
    %v1900 = vpack.c.b16 %v1838, %v1837
    %v1901 = vpack.c.b16 %v1840, %v1839
    %v1902 = vpack.c.b16 %v1842, %v1841
    %v1903 = vpack.c.b16 %v1844, %v1843
    %v1904 = vpack.c.b16 %v1846, %v1845
    %v1905 = vpack.c.b16 %v1848, %v1847
    %v1906 = vpack.c.b16 %v1850, %v1849
    %v1907 = vpack.c.b16 %v1852, %v1851
    %v1908 = vpack.c.b16 %v1854, %v1853
    %v1909 = vpack.c.b16 %v1856, %v1855
    %v1910 = vpack.c.b16 %v1858, %v1857
    %v1911 = vpack.c.b16 %v1860, %v1859
    %v1912 = vpack.c.b16 %v1862, %v1861
    %v1913 = vpack.c.b16 %v1864, %v1863
    %v1914 = vpack.c.b16 %v1866, %v1865
    %v1915 = vpack.c.b16 %v1868, %v1867
    %v1916 = vpack.c.b16 %v1870, %v1869
    %v1917 = vpack.c.b16 %v1872, %v1871
    %v1918 = vpack.c.b16 %v1874, %v1873
    %v1919 = vpack.c.b16 %v1876, %v1875
    %v1920 = vpack.c.b16 %v1878, %v1877
    %v1921 = vpack.c.b16 %v1880, %v1879
    %v1922 = vpack.c.b16 %v1882, %v1881
    %v1923 = vpack.c.b16 %v1884, %v1883
    %v1924 = vpack.c.b16 %v1886, %v1885
    %v1925 = vpack.c.b16 %v1888, %v1887
    %v1926 = vpack.c.b16 %v1890, %v1889
    %v1927 = vpack.c.b16 %v1892, %v1891
    %v1928 = vpack.c.b16 %v1894, %v1893
    %v1929 = vpack.c.b16 %v1896, %v1895
    %v1930 = vpack.c.b16 %v1898, %v1897
    %1963 = vst [vmem:[#allocation14] sm:$0xff] %v1899
    %1964 = vst [vmem:[#allocation14 + $0x8] sm:$0xff] %v1900
    %1965 = vst [vmem:[#allocation14 + $0x10] sm:$0xff] %v1901
    %1966 = vst [vmem:[#allocation14 + $0x18] sm:$0xff] %v1902
    %1967 = vst [vmem:[#allocation14 + $0x20] sm:$0xff] %v1903
    %1968 = vst [vmem:[#allocation14 + $0x28] sm:$0xff] %v1904
    %1969 = vst [vmem:[#allocation14 + $0x30] sm:$0xff] %v1905
    %1970 = vst [vmem:[#allocation14 + $0x38] sm:$0xff] %v1906
    %1971 = vst [vmem:[#allocation14 + $0x40] sm:$0xff] %v1907
    %1972 = vst [vmem:[#allocation14 + $0x48] sm:$0xff] %v1908
    %1973 = vst [vmem:[#allocation14 + $0x50] sm:$0xff] %v1909
    %1974 = vst [vmem:[#allocation14 + $0x58] sm:$0xff] %v1910
    %1975 = vst [vmem:[#allocation14 + $0x60] sm:$0xff] %v1911
    %1976 = vst [vmem:[#allocation14 + $0x68] sm:$0xff] %v1912
    %1977 = vst [vmem:[#allocation14 + $0x70] sm:$0xff] %v1913
    %1978 = vst [vmem:[#allocation14 + $0x78] sm:$0xff] %v1914
    %1979 = vst [vmem:[#allocation14 + $0x80] sm:$0xff] %v1915
    %1980 = vst [vmem:[#allocation14 + $0x88] sm:$0xff] %v1916
    %1981 = vst [vmem:[#allocation14 + $0x90] sm:$0xff] %v1917
    %1982 = vst [vmem:[#allocation14 + $0x98] sm:$0xff] %v1918
    %1983 = vst [vmem:[#allocation14 + $0xa0] sm:$0xff] %v1919
    %1984 = vst [vmem:[#allocation14 + $0xa8] sm:$0xff] %v1920
    %1985 = vst [vmem:[#allocation14 + $0xb0] sm:$0xff] %v1921
    %1986 = vst [vmem:[#allocation14 + $0xb8] sm:$0xff] %v1922
    %1987 = vst [vmem:[#allocation14 + $0xc0] sm:$0xff] %v1923
    %1988 = vst [vmem:[#allocation14 + $0xc8] sm:$0xff] %v1924
    %1989 = vst [vmem:[#allocation14 + $0xd0] sm:$0xff] %v1925
    %1990 = vst [vmem:[#allocation14 + $0xd8] sm:$0xff] %v1926
    %1991 = vst [vmem:[#allocation14 + $0xe0] sm:$0xff] %v1927
    %1992 = vst [vmem:[#allocation14 + $0xe8] sm:$0xff] %v1928
    %1993 = vst [vmem:[#allocation14 + $0xf0] sm:$0xff] %v1929
    %1994 = vst [vmem:[#allocation14 + $0xf8] sm:$0xff] %v1930
    // Predicated region
    $region58: #{tpu_custom_call.1} parent=1 // pred_check
      _
    $region59: #{tpu_custom_call.1} parent=1 // pred_check_branch
      %1996 = sbr.rel (0) target = $region61
    $region60: #{tpu_custom_call.1} parent=1 // pred_region
      %s1998 = ssub.s32 2048, 2048
      %1999 = vsyncadd [#allocation4], %s1998
      %s2000 = sshll.u32 [#allocation13], 4
      %s2001 = int_to_ptr.vmem [resolvable:$true] %s2000
      %2006 = dma.vmem_to_hbm [thread:$0]  %s2001, 2048, %s8, [#allocation4], 64, 64, 4
    $region61: #{tpu_custom_call.1} parent=1 // pred_fallthru
      _
    // Predicated region
    $region62: #{tpu_custom_call.1} parent=1 // pred_check
      _
    $region63: #{tpu_custom_call.1} parent=1 // pred_check_branch
      %2008 = sbr.rel (0) target = $region65
    $region64: #{tpu_custom_call.1} parent=1 // pred_region
      %s2010 = ssub.s32 4096, 4096
      %2011 = vsyncadd [#allocation15], %s2010
      %s2012 = sshll.u32 [#allocation14], 4
      %s2013 = int_to_ptr.vmem [resolvable:$true] %s2012
      %2018 = dma.vmem_to_hbm [thread:$0]  %s2013, 4096, %s9, [#allocation15], 128, 128, 8
    $region65: #{tpu_custom_call.1} parent=1 // pred_fallthru
      _
    // Predicated region
    $region66: #{tpu_custom_call.1} parent=1 // pred_check
      _
    $region67: #{tpu_custom_call.1} parent=1 // pred_check_branch
      %2020 = sbr.rel (0) target = $region69
    $region68: #{tpu_custom_call.1} parent=1 // pred_region
      %2021 = dma.done [#allocation4], 2048
    $region69: #{tpu_custom_call.1} parent=1 // pred_fallthru
      _
    // Predicated region
    $region70: #{tpu_custom_call.1} parent=1 // pred_check
      _
    $region71: #{tpu_custom_call.1} parent=1 // pred_check_branch
      %2023 = sbr.rel (0) target = $region73
    $region72: #{tpu_custom_call.1} parent=1 // pred_region
      %2024 = dma.done [#allocation15], 4096
    $region73: #{tpu_custom_call.1} parent=1 // pred_fallthru
      _
    %2025 = vsyncpa [#allocation3], 1
    %2026 = vsyncpa [#allocation6], 1
    %2027 = vsyncpa [#allocation9], 1
    %2028 = vsyncpa [#allocation12], 1
    %2029 = vsyncpa [#allocation4], 1
    %2030 = vsyncpa [#allocation15], 1

</llo_original>
